<compile_context>
chip_gen: v7x
topology: tpu7x:2x2x1
jax: 0.10.0
libtpu: 0.0.40
codegen_flags: <defaults>
</compile_context>

<pallas_src>
import jax
import jax.numpy as jnp
from jax.experimental import pallas as pl
from jax.experimental.pallas import tpu as pltpu


def _round_up(v, m):
    return ((v + m - 1) // m) * m


def _make_conv_kernel(n, ho, wo, kh_sz, kw_sz, cin, kpad):
    k = kh_sz * kw_sz * cin

    def kernel(x_ref, w_ref, o_ref):
        """Single grid step over the whole (toy) problem.

        x_ref: (n, Hp, Wp, Cin)        f32 spatially padded input
        w_ref: (Cout_pad, KPAD)        bf16 flipped im2col weight (K zero-padded)
        o_ref: (n, Cout_pad, Ho*Wo)    f32 NCHW-flat output
        """
        for b in range(n):  # static unroll; batch folded into one grid step
            xb = x_ref[b]  # (Hp, Wp, Cin) f32

            # im2col in vregs: 9 statically-shifted taps concatenated along
            # lanes + zero slab up to KPAD.  No VMEM scratch, no zero-fill,
            # no masked scatter stores; the lane placement rides in the XLU.
            taps = []
            for kh in range(kh_sz):
                for kw in range(kw_sz):
                    taps.append(xb[kh:kh + ho, kw:kw + wo, :])
            if kpad > k:
                taps.append(jnp.zeros((ho, wo, kpad - k), xb.dtype))
            cols = jnp.concatenate(taps, axis=-1)              # (Ho, Wo, KPAD)
            cols = cols.reshape(ho * wo, kpad).astype(jnp.bfloat16)

            # Flash-style orientation: (Cout, KPAD) . (M, KPAD)^T -> (Cout, M).
            # bf16 operands, f32 accumulation; output rows = real Cout (padded
            # only to the 8-sublane granule), columns are lane-dense.
            o_ref[b] = jax.lax.dot_general(
                w_ref[...], cols,
                dimension_numbers=(((1,), (1,)), ((), ())),
                preferred_element_type=jnp.float32)

    return kernel


def basic_conv2d_n(x_nchw, weight_oihw, *, stride=1, padding=1):
    """Forward of BasicConv2d_N (conv only, no bias, no activation).

    x_nchw:      (N, Cin, H, W)
    weight_oihw: (Cout, Cin, KH, KW)
    returns:     (N, Cout, Ho, Wo)
    """
    assert stride == 1, "this synthetic kernel implements stride=1"
    n, cin, h, w = x_nchw.shape
    cout, cin_w, kh, kw = weight_oihw.shape
    assert cin == cin_w

    hp, wp = h + 2 * padding, w + 2 * padding
    ho, wo = hp - kh + 1, wp - kw + 1
    k = kh * kw * cin

    kpad = _round_up(k, 128)       # contraction dim padded to one 128-lane tile
    cout_pad = _round_up(cout, 8)  # output rows only need sublane alignment now

    # NCHW -> NHWC + spatial zero-pad, kept in f32 (tiny: ~5 KiB/image); all
    # sublane-offset tap slicing inside the kernel happens on 32-bit data.
    x_nhwc = jnp.transpose(x_nchw, (0, 2, 3, 1)).astype(jnp.float32)
    x_pad = jnp.pad(
        x_nhwc, ((0, 0), (padding, padding), (padding, padding), (0, 0)))

    # Weight: OIHW -> (Cout, KH, KW, Cin) -> (Cout, K) -> zero-pad K (and Cout
    # to the 8-sublane granule) -> bf16.  Pre-transposed in the wrapper so the
    # kernel never does an XLU transpose.
    w_flip = jnp.transpose(weight_oihw, (0, 2, 3, 1)).reshape(cout, k)
    w_flip = jnp.pad(w_flip, ((0, cout_pad - cout), (0, kpad - k)))
    w_flip = w_flip.astype(jnp.bfloat16)

    kernel = _make_conv_kernel(n, ho, wo, kh, kw, cin, kpad)

    out_flat = pl.pallas_call(
        kernel,
        out_shape=jax.ShapeDtypeStruct((n, cout_pad, ho * wo), jnp.float32),
        grid=(1,),
        in_specs=[
            pl.BlockSpec((n, hp, wp, cin), lambda i: (0, 0, 0, 0)),
            pl.BlockSpec((cout_pad, kpad), lambda i: (0, 0)),
        ],
        out_specs=pl.BlockSpec((n, cout_pad, ho * wo), lambda i: (0, 0, 0)),
        compiler_params=pltpu.CompilerParams(
            dimension_semantics=("arbitrary",)),
    )(x_pad, w_flip)

    # Output is already NCHW-flat: just (possibly) drop Cout padding + reshape.
    out = out_flat[:, :cout, :].reshape(n, cout, ho, wo)
    return out.astype(x_nchw.dtype)


if __name__ == "__main__":
    key = jax.random.PRNGKey(0)
    k_x, k_w = jax.random.split(key)

    # Small shapes consistent with the module: N=2, Cin=4, H=W=16, Cout=8, 3x3 conv.
    N, CIN, H, W = 2, 4, 16, 16
    COUT, KH, KW = 8, 3, 3

    x = jax.random.normal(k_x, (N, CIN, H, W), dtype=jnp.float32)
    weight = jax.random.normal(k_w, (COUT, CIN, KH, KW), dtype=jnp.float32) * 0.1

    out = basic_conv2d_n(x, weight, padding=1, stride=1)
    out = jax.block_until_ready(out)

    # Reference on the same bf16-rounded operands (the kernel feeds the MXU
    # bf16 inputs with f32 accumulation), so the check isolates the kernel.
    x_bf = x.astype(jnp.bfloat16).astype(jnp.float32)
    w_bf = weight.astype(jnp.bfloat16).astype(jnp.float32)
    ref = jax.lax.conv_general_dilated(
        x_bf, w_bf, window_strides=(1, 1), padding=((1, 1), (1, 1)),
        dimension_numbers=("NCHW", "OIHW", "NCHW"),
        precision=jax.lax.Precision.HIGHEST)
    assert out.shape == ref.shape
    assert jnp.max(jnp.abs(out - ref)) < 2e-3

    print("KERNEL_OK")
</pallas_src>

<mosaic_0001>
module attributes {stable_mosaic.version = 11 : i64} {
  func.func @kernel(%arg0: i32, %arg1: memref<2x18x18x4xf32, #tpu.memory_space<vmem>>, %arg2: memref<8x128xbf16, #tpu.memory_space<vmem>>, %arg3: memref<2x8x256xf32, #tpu.memory_space<vmem>>) attributes {dimension_semantics = [#tpu.dimension_semantics<arbitrary>], iteration_bounds = array<i64: 1>, scalar_prefetch = 0 : i64, scratch_operands = 0 : i64, tpu.core_type = #tpu.core_type<tc>, window_params = [{pipeline_mode = #tpu.pipeline_mode<synchronous>, transform_indices = @transform_0, window_bounds = array<i64: 2, 18, 18, 4>}, {pipeline_mode = #tpu.pipeline_mode<synchronous>, transform_indices = @transform_1, window_bounds = array<i64: 8, 128>}, {pipeline_mode = #tpu.pipeline_mode<synchronous>, transform_indices = @transform_2, window_bounds = array<i64: 2, 8, 256>}]} {
    %c0 = arith.constant 0 : index
    %c0_0 = arith.constant 0 : index
    %c0_1 = arith.constant 0 : index
    %c0_2 = arith.constant 0 : index
    %0 = vector.load %arg1[%c0, %c0_0, %c0_1, %c0_2] : memref<2x18x18x4xf32, #tpu.memory_space<vmem>>, vector<1x18x18x4xf32>
    %1 = vector.shape_cast %0 : vector<1x18x18x4xf32> to vector<18x18x4xf32>
    %2 = vector.extract_strided_slice %1 {offsets = [0, 0, 0], sizes = [16, 16, 4], strides = [1, 1, 1]} : vector<18x18x4xf32> to vector<16x16x4xf32>
    %3 = vector.extract_strided_slice %1 {offsets = [0, 1, 0], sizes = [16, 16, 4], strides = [1, 1, 1]} : vector<18x18x4xf32> to vector<16x16x4xf32>
    %4 = vector.extract_strided_slice %1 {offsets = [0, 2, 0], sizes = [16, 16, 4], strides = [1, 1, 1]} : vector<18x18x4xf32> to vector<16x16x4xf32>
    %5 = vector.extract_strided_slice %1 {offsets = [1, 0, 0], sizes = [16, 16, 4], strides = [1, 1, 1]} : vector<18x18x4xf32> to vector<16x16x4xf32>
    %6 = vector.extract_strided_slice %1 {offsets = [1, 1, 0], sizes = [16, 16, 4], strides = [1, 1, 1]} : vector<18x18x4xf32> to vector<16x16x4xf32>
    %7 = vector.extract_strided_slice %1 {offsets = [1, 2, 0], sizes = [16, 16, 4], strides = [1, 1, 1]} : vector<18x18x4xf32> to vector<16x16x4xf32>
    %8 = vector.extract_strided_slice %1 {offsets = [2, 0, 0], sizes = [16, 16, 4], strides = [1, 1, 1]} : vector<18x18x4xf32> to vector<16x16x4xf32>
    %9 = vector.extract_strided_slice %1 {offsets = [2, 1, 0], sizes = [16, 16, 4], strides = [1, 1, 1]} : vector<18x18x4xf32> to vector<16x16x4xf32>
    %10 = vector.extract_strided_slice %1 {offsets = [2, 2, 0], sizes = [16, 16, 4], strides = [1, 1, 1]} : vector<18x18x4xf32> to vector<16x16x4xf32>
    %cst = arith.constant 0.000000e+00 : f32
    %11 = vector.broadcast %cst : f32 to vector<16x16x92xf32>
    %12 = tpu.concatenate %2, %3, %4, %5, %6, %7, %8, %9, %10, %11 in 2 : vector<16x16x4xf32>, vector<16x16x4xf32>, vector<16x16x4xf32>, vector<16x16x4xf32>, vector<16x16x4xf32>, vector<16x16x4xf32>, vector<16x16x4xf32>, vector<16x16x4xf32>, vector<16x16x4xf32>, vector<16x16x92xf32> -> vector<16x16x128xf32>
    %13 = vector.shape_cast %12 : vector<16x16x128xf32> to vector<256x128xf32>
    %14 = arith.truncf %13 : vector<256x128xf32> to vector<256x128xbf16>
    %c0_3 = arith.constant 0 : index
    %c0_4 = arith.constant 0 : index
    %15 = vector.load %arg2[%c0_3, %c0_4] : memref<8x128xbf16, #tpu.memory_space<vmem>>, vector<8x128xbf16>
    %cst_5 = arith.constant dense<0.000000e+00> : vector<8x256xf32>
    %16 = tpu.matmul %15, %14, %cst_5 {dimension_numbers = #tpu.dot_dimension_numbers<[1], [1], [0], [0], [0, 0, 1, 0], [], []>} : vector<8x128xbf16>, vector<256x128xbf16>, vector<8x256xf32> -> vector<8x256xf32>
    %c0_6 = arith.constant 0 : index
    %c0_7 = arith.constant 0 : index
    %c0_8 = arith.constant 0 : index
    %17 = vector.load %arg3[%c0_6, %c0_7, %c0_8] : memref<2x8x256xf32, #tpu.memory_space<vmem>>, vector<1x8x256xf32>
    %18 = vector.shape_cast %17 : vector<1x8x256xf32> to vector<8x256xf32>
    %19 = vector.shape_cast %16 : vector<8x256xf32> to vector<1x8x256xf32>
    tpu.vector_store %arg3[%c0_6, %c0_7, %c0_8], %19 {strides = array<i32>} : memref<2x8x256xf32, #tpu.memory_space<vmem>>, vector<1x8x256xf32>,
    %c1 = arith.constant 1 : index
    %c0_9 = arith.constant 0 : index
    %c0_10 = arith.constant 0 : index
    %c0_11 = arith.constant 0 : index
    %20 = vector.load %arg1[%c1, %c0_9, %c0_10, %c0_11] : memref<2x18x18x4xf32, #tpu.memory_space<vmem>>, vector<1x18x18x4xf32>
    %21 = vector.shape_cast %20 : vector<1x18x18x4xf32> to vector<18x18x4xf32>
    %22 = vector.extract_strided_slice %21 {offsets = [0, 0, 0], sizes = [16, 16, 4], strides = [1, 1, 1]} : vector<18x18x4xf32> to vector<16x16x4xf32>
    %23 = vector.extract_strided_slice %21 {offsets = [0, 1, 0], sizes = [16, 16, 4], strides = [1, 1, 1]} : vector<18x18x4xf32> to vector<16x16x4xf32>
    %24 = vector.extract_strided_slice %21 {offsets = [0, 2, 0], sizes = [16, 16, 4], strides = [1, 1, 1]} : vector<18x18x4xf32> to vector<16x16x4xf32>
    %25 = vector.extract_strided_slice %21 {offsets = [1, 0, 0], sizes = [16, 16, 4], strides = [1, 1, 1]} : vector<18x18x4xf32> to vector<16x16x4xf32>
    %26 = vector.extract_strided_slice %21 {offsets = [1, 1, 0], sizes = [16, 16, 4], strides = [1, 1, 1]} : vector<18x18x4xf32> to vector<16x16x4xf32>
    %27 = vector.extract_strided_slice %21 {offsets = [1, 2, 0], sizes = [16, 16, 4], strides = [1, 1, 1]} : vector<18x18x4xf32> to vector<16x16x4xf32>
    %28 = vector.extract_strided_slice %21 {offsets = [2, 0, 0], sizes = [16, 16, 4], strides = [1, 1, 1]} : vector<18x18x4xf32> to vector<16x16x4xf32>
    %29 = vector.extract_strided_slice %21 {offsets = [2, 1, 0], sizes = [16, 16, 4], strides = [1, 1, 1]} : vector<18x18x4xf32> to vector<16x16x4xf32>
    %30 = vector.extract_strided_slice %21 {offsets = [2, 2, 0], sizes = [16, 16, 4], strides = [1, 1, 1]} : vector<18x18x4xf32> to vector<16x16x4xf32>
    %cst_12 = arith.constant 0.000000e+00 : f32
    %31 = vector.broadcast %cst_12 : f32 to vector<16x16x92xf32>
    %32 = tpu.concatenate %22, %23, %24, %25, %26, %27, %28, %29, %30, %31 in 2 : vector<16x16x4xf32>, vector<16x16x4xf32>, vector<16x16x4xf32>, vector<16x16x4xf32>, vector<16x16x4xf32>, vector<16x16x4xf32>, vector<16x16x4xf32>, vector<16x16x4xf32>, vector<16x16x4xf32>, vector<16x16x92xf32> -> vector<16x16x128xf32>
    %33 = vector.shape_cast %32 : vector<16x16x128xf32> to vector<256x128xf32>
    %34 = arith.truncf %33 : vector<256x128xf32> to vector<256x128xbf16>
    %c0_13 = arith.constant 0 : index
    %c0_14 = arith.constant 0 : index
    %35 = vector.load %arg2[%c0_13, %c0_14] : memref<8x128xbf16, #tpu.memory_space<vmem>>, vector<8x128xbf16>
    %cst_15 = arith.constant dense<0.000000e+00> : vector<8x256xf32>
    %36 = tpu.matmul %35, %34, %cst_15 {dimension_numbers = #tpu.dot_dimension_numbers<[1], [1], [0], [0], [0, 0, 1, 0], [], []>} : vector<8x128xbf16>, vector<256x128xbf16>, vector<8x256xf32> -> vector<8x256xf32>
    %c1_16 = arith.constant 1 : index
    %c0_17 = arith.constant 0 : index
    %c0_18 = arith.constant 0 : index
    %37 = vector.load %arg3[%c1_16, %c0_17, %c0_18] : memref<2x8x256xf32, #tpu.memory_space<vmem>>, vector<1x8x256xf32>
    %38 = vector.shape_cast %37 : vector<1x8x256xf32> to vector<8x256xf32>
    %39 = vector.shape_cast %36 : vector<8x256xf32> to vector<1x8x256xf32>
    tpu.vector_store %arg3[%c1_16, %c0_17, %c0_18], %39 {strides = array<i32>} : memref<2x8x256xf32, #tpu.memory_space<vmem>>, vector<1x8x256xf32>,
    return
  }
  func.func @transform_0(%arg0: i32) -> (i32, i32, i32, i32) {
    %c0_i32 = arith.constant 0 : i32
    %c0_i32_0 = arith.constant 0 : i32
    %c0_i32_1 = arith.constant 0 : i32
    %c0_i32_2 = arith.constant 0 : i32
    %c0_i32_3 = arith.constant 0 : i32
    return %c0_i32, %c0_i32_0, %c0_i32_1, %c0_i32_2 : i32, i32, i32, i32
  }
  func.func @transform_1(%arg0: i32) -> (i32, i32) {
    %c0_i32 = arith.constant 0 : i32
    %c0_i32_0 = arith.constant 0 : i32
    %c0_i32_1 = arith.constant 0 : i32
    return %c0_i32, %c0_i32_0 : i32, i32
  }
  func.func @transform_2(%arg0: i32) -> (i32, i32, i32) {
    %c0_i32 = arith.constant 0 : i32
    %c0_i32_0 = arith.constant 0 : i32
    %c0_i32_1 = arith.constant 0 : i32
    %c0_i32_2 = arith.constant 0 : i32
    return %c0_i32, %c0_i32_0, %c0_i32_1 : i32, i32, i32
  }
}

</mosaic_0001>

<llo_original>
// kernel: tpu_custom_call.1
$region0: #{tpu_custom_call.1}
  #allocation0 [shape = 'u32[]', space=smem, size = 0x4, offset = 0x4, fixed_abs, tag = 'smem constant byte address 0x4 - core index']
  #allocation1 [shape = 'u32[144,128]{1,0:T(1,128)}', space=vmem, size = 0x12000, scoped, tag = 'internal scratch']
  %s0 = inlined_call_operand.vmem [shape: f32[2,18,18,4], index: 0, kind: input, shape index: {}]
  %s1 = inlined_call_operand.vmem [shape: bf16[8,128], index: 1, kind: input, shape index: {}]
  %s2 = inlined_call_operand.hbm [shape: f32[2,8,256], index: 2, kind: output, shape index: {}]
  %s3 = sld [smem:[#allocation0]]
  $region18: #{tpu_custom_call.1} parent=0
    _
  %s5 = ssub.s32 1, %s3
  %s6 = scalar_select 0, %s5, %s3
  $region1: #{tpu_custom_call.1} parent=0
    #allocation2 [shape = 'u8[16384]{0}', space=vmem, size = 0x4000, scoped, tag = 'output window, operand 0, single buffered']
    #allocation3 [shape = 's32[1]{0}', space=sflag, size = 0x4, scoped, tag = 'scoped memory for tpu_custom_call.1']
    %7 = vsyncpa [#allocation3], 0
    // Predicated region
    $region2: #{tpu_custom_call.1} parent=1 // pred_check
      _
    $region3: #{tpu_custom_call.1} parent=1 // pred_check_branch
      %9 = sbr.rel (0) target = $region5
    $region4: #{tpu_custom_call.1} parent=1 // pred_region
      _
    $region5: #{tpu_custom_call.1} parent=1 // pred_fallthru
      _
    // Predicated region
    $region6: #{tpu_custom_call.1} parent=1 // pred_check
      _
    $region7: #{tpu_custom_call.1} parent=1 // pred_check_branch
      %11 = sbr.rel (0) target = $region9
    $region8: #{tpu_custom_call.1} parent=1 // pred_region
      _
    $region9: #{tpu_custom_call.1} parent=1 // pred_fallthru
      _
    %v13 = vld [vmem:[%s0] sm:$0xff]
    %v14 = vld [vmem:[%s0 + $0x8] sm:$0xff]
    %v15 = vld [vmem:[%s0 + $0x10] sm:$0x3]
    %v16 = vld [vmem:[%s0 + $0x18] sm:$0xff]
    %v17 = vld [vmem:[%s0 + $0x20] sm:$0xff]
    %v18 = vld [vmem:[%s0 + $0x28] sm:$0x3]
    %v19 = vld [vmem:[%s0 + $0x30] sm:$0xff]
    %v20 = vld [vmem:[%s0 + $0x38] sm:$0xff]
    %v21 = vld [vmem:[%s0 + $0x40] sm:$0x3]
    %v22 = vld [vmem:[%s0 + $0x48] sm:$0xff]
    %v23 = vld [vmem:[%s0 + $0x50] sm:$0xff]
    %v24 = vld [vmem:[%s0 + $0x58] sm:$0x3]
    %v25 = vld [vmem:[%s0 + $0x60] sm:$0xff]
    %v26 = vld [vmem:[%s0 + $0x68] sm:$0xff]
    %v27 = vld [vmem:[%s0 + $0x70] sm:$0x3]
    %v28 = vld [vmem:[%s0 + $0x78] sm:$0xff]
    %v29 = vld [vmem:[%s0 + $0x80] sm:$0xff]
    %v30 = vld [vmem:[%s0 + $0x88] sm:$0x3]
    %v31 = vld [vmem:[%s0 + $0x90] sm:$0xff]
    %v32 = vld [vmem:[%s0 + $0x98] sm:$0xff]
    %v33 = vld [vmem:[%s0 + $0xa0] sm:$0x3]
    %v34 = vld [vmem:[%s0 + $0xa8] sm:$0xff]
    %v35 = vld [vmem:[%s0 + $0xb0] sm:$0xff]
    %v36 = vld [vmem:[%s0 + $0xb8] sm:$0x3]
    %v37 = vld [vmem:[%s0 + $0xc0] sm:$0xff]
    %v38 = vld [vmem:[%s0 + $0xc8] sm:$0xff]
    %v39 = vld [vmem:[%s0 + $0xd0] sm:$0x3]
    %v40 = vld [vmem:[%s0 + $0xd8] sm:$0xff]
    %v41 = vld [vmem:[%s0 + $0xe0] sm:$0xff]
    %v42 = vld [vmem:[%s0 + $0xe8] sm:$0x3]
    %v43 = vld [vmem:[%s0 + $0xf0] sm:$0xff]
    %v44 = vld [vmem:[%s0 + $0xf8] sm:$0xff]
    %v45 = vld [vmem:[%s0 + $0x100] sm:$0x3]
    %v46 = vld [vmem:[%s0 + $0x108] sm:$0xff]
    %v47 = vld [vmem:[%s0 + $0x110] sm:$0xff]
    %v48 = vld [vmem:[%s0 + $0x118] sm:$0x3]
    %v49 = vld [vmem:[%s0 + $0x120] sm:$0xff]
    %v50 = vld [vmem:[%s0 + $0x128] sm:$0xff]
    %v51 = vld [vmem:[%s0 + $0x130] sm:$0x3]
    %v52 = vld [vmem:[%s0 + $0x138] sm:$0xff]
    %v53 = vld [vmem:[%s0 + $0x140] sm:$0xff]
    %v54 = vld [vmem:[%s0 + $0x148] sm:$0x3]
    %v55 = vld [vmem:[%s0 + $0x150] sm:$0xff]
    %v56 = vld [vmem:[%s0 + $0x158] sm:$0xff]
    %v57 = vld [vmem:[%s0 + $0x160] sm:$0x3]
    %v58 = vld [vmem:[%s0 + $0x168] sm:$0xff]
    %v59 = vld [vmem:[%s0 + $0x170] sm:$0xff]
    %v60 = vld [vmem:[%s0 + $0x178] sm:$0x3]
    %v61 = vld [vmem:[%s0 + $0x180] sm:$0xff]
    %v62 = vld [vmem:[%s0 + $0x188] sm:$0xff]
    %v63 = vld [vmem:[%s0 + $0x190] sm:$0x3]
    %v64 = vld [vmem:[%s0 + $0x198] sm:$0xff]
    %v65 = vld [vmem:[%s0 + $0x1a0] sm:$0xff]
    %v66 = vld [vmem:[%s0 + $0x1a8] sm:$0x3]
    %vm115 = vcmask 1046528
    %v116 = vrot.slane %v13, 1
    %v117 = vrot.slane %v14, 1
    %v118 = vsel %vm115, %v116, %v117
    %v119 = vrot.slane %v15, 1
    %v120 = vsel %vm115, %v117, %v119
    %v121 = vrot.slane %v16, 1
    %v122 = vrot.slane %v17, 1
    %v123 = vsel %vm115, %v121, %v122
    %v124 = vrot.slane %v18, 1
    %v125 = vsel %vm115, %v122, %v124
    %v126 = vrot.slane %v19, 1
    %v127 = vrot.slane %v20, 1
    %v128 = vsel %vm115, %v126, %v127
    %v129 = vrot.slane %v21, 1
    %v130 = vsel %vm115, %v127, %v129
    %v131 = vrot.slane %v22, 1
    %v132 = vrot.slane %v23, 1
    %v133 = vsel %vm115, %v131, %v132
    %v134 = vrot.slane %v24, 1
    %v135 = vsel %vm115, %v132, %v134
    %v136 = vrot.slane %v25, 1
    %v137 = vrot.slane %v26, 1
    %v138 = vsel %vm115, %v136, %v137
    %v139 = vrot.slane %v27, 1
    %v140 = vsel %vm115, %v137, %v139
    %v141 = vrot.slane %v28, 1
    %v142 = vrot.slane %v29, 1
    %v143 = vsel %vm115, %v141, %v142
    %v144 = vrot.slane %v30, 1
    %v145 = vsel %vm115, %v142, %v144
    %v146 = vrot.slane %v31, 1
    %v147 = vrot.slane %v32, 1
    %v148 = vsel %vm115, %v146, %v147
    %v149 = vrot.slane %v33, 1
    %v150 = vsel %vm115, %v147, %v149
    %v151 = vrot.slane %v34, 1
    %v152 = vrot.slane %v35, 1
    %v153 = vsel %vm115, %v151, %v152
    %v154 = vrot.slane %v36, 1
    %v155 = vsel %vm115, %v152, %v154
    %v156 = vrot.slane %v37, 1
    %v157 = vrot.slane %v38, 1
    %v158 = vsel %vm115, %v156, %v157
    %v159 = vrot.slane %v39, 1
    %v160 = vsel %vm115, %v157, %v159
    %v161 = vrot.slane %v40, 1
    %v162 = vrot.slane %v41, 1
    %v163 = vsel %vm115, %v161, %v162
    %v164 = vrot.slane %v42, 1
    %v165 = vsel %vm115, %v162, %v164
    %v166 = vrot.slane %v43, 1
    %v167 = vrot.slane %v44, 1
    %v168 = vsel %vm115, %v166, %v167
    %v169 = vrot.slane %v45, 1
    %v170 = vsel %vm115, %v167, %v169
    %v171 = vrot.slane %v46, 1
    %v172 = vrot.slane %v47, 1
    %v173 = vsel %vm115, %v171, %v172
    %v174 = vrot.slane %v48, 1
    %v175 = vsel %vm115, %v172, %v174
    %v176 = vrot.slane %v49, 1
    %v177 = vrot.slane %v50, 1
    %v178 = vsel %vm115, %v176, %v177
    %v179 = vrot.slane %v51, 1
    %v180 = vsel %vm115, %v177, %v179
    %v181 = vrot.slane %v52, 1
    %v182 = vrot.slane %v53, 1
    %v183 = vsel %vm115, %v181, %v182
    %v184 = vrot.slane %v54, 1
    %v185 = vsel %vm115, %v182, %v184
    %v186 = vrot.slane %v55, 1
    %v187 = vrot.slane %v56, 1
    %v188 = vsel %vm115, %v186, %v187
    %v189 = vrot.slane %v57, 1
    %v190 = vsel %vm115, %v187, %v189
    %v191 = vrot.slane %v58, 1
    %v192 = vrot.slane %v59, 1
    %v193 = vsel %vm115, %v191, %v192
    %v194 = vrot.slane %v60, 1
    %v195 = vsel %vm115, %v192, %v194
    %196 = vrot.lane.b32.xlu0 %v118, 4
    %v197 = vpop.permute.xlu0 %196
    %198 = vrot.lane.b32.xlu0 %v120, 4
    %v199 = vpop.permute.xlu0 %198
    %200 = vrot.lane.b32.xlu0 %v123, 4
    %v201 = vpop.permute.xlu0 %200
    %202 = vrot.lane.b32.xlu0 %v125, 4
    %v203 = vpop.permute.xlu0 %202
    %204 = vrot.lane.b32.xlu0 %v128, 4
    %v205 = vpop.permute.xlu0 %204
    %206 = vrot.lane.b32.xlu0 %v130, 4
    %v207 = vpop.permute.xlu0 %206
    %208 = vrot.lane.b32.xlu0 %v133, 4
    %v209 = vpop.permute.xlu0 %208
    %210 = vrot.lane.b32.xlu0 %v135, 4
    %v211 = vpop.permute.xlu0 %210
    %212 = vrot.lane.b32.xlu0 %v138, 4
    %v213 = vpop.permute.xlu0 %212
    %214 = vrot.lane.b32.xlu0 %v140, 4
    %v215 = vpop.permute.xlu0 %214
    %216 = vrot.lane.b32.xlu0 %v143, 4
    %v217 = vpop.permute.xlu0 %216
    %218 = vrot.lane.b32.xlu0 %v145, 4
    %v219 = vpop.permute.xlu0 %218
    %220 = vrot.lane.b32.xlu0 %v148, 4
    %v221 = vpop.permute.xlu0 %220
    %222 = vrot.lane.b32.xlu0 %v150, 4
    %v223 = vpop.permute.xlu0 %222
    %224 = vrot.lane.b32.xlu0 %v153, 4
    %v225 = vpop.permute.xlu0 %224
    %226 = vrot.lane.b32.xlu0 %v155, 4
    %v227 = vpop.permute.xlu0 %226
    %228 = vrot.lane.b32.xlu0 %v158, 4
    %v229 = vpop.permute.xlu0 %228
    %230 = vrot.lane.b32.xlu0 %v160, 4
    %v231 = vpop.permute.xlu0 %230
    %232 = vrot.lane.b32.xlu0 %v163, 4
    %v233 = vpop.permute.xlu0 %232
    %234 = vrot.lane.b32.xlu0 %v165, 4
    %v235 = vpop.permute.xlu0 %234
    %236 = vrot.lane.b32.xlu0 %v168, 4
    %v237 = vpop.permute.xlu0 %236
    %238 = vrot.lane.b32.xlu0 %v170, 4
    %v239 = vpop.permute.xlu0 %238
    %240 = vrot.lane.b32.xlu0 %v173, 4
    %v241 = vpop.permute.xlu0 %240
    %242 = vrot.lane.b32.xlu0 %v175, 4
    %v243 = vpop.permute.xlu0 %242
    %244 = vrot.lane.b32.xlu0 %v178, 4
    %v245 = vpop.permute.xlu0 %244
    %246 = vrot.lane.b32.xlu0 %v180, 4
    %v247 = vpop.permute.xlu0 %246
    %248 = vrot.lane.b32.xlu0 %v183, 4
    %v249 = vpop.permute.xlu0 %248
    %250 = vrot.lane.b32.xlu0 %v185, 4
    %v251 = vpop.permute.xlu0 %250
    %252 = vrot.lane.b32.xlu0 %v188, 4
    %v253 = vpop.permute.xlu0 %252
    %254 = vrot.lane.b32.xlu0 %v190, 4
    %v255 = vpop.permute.xlu0 %254
    %256 = vrot.lane.b32.xlu0 %v193, 4
    %v257 = vpop.permute.xlu0 %256
    %258 = vrot.lane.b32.xlu0 %v195, 4
    %v259 = vpop.permute.xlu0 %258
    %vm292 = vcmask 1045504
    %v293 = vrot.slane %v13, 2
    %v294 = vrot.slane %v14, 2
    %v295 = vsel %vm292, %v293, %v294
    %v296 = vrot.slane %v15, 2
    %v297 = vsel %vm292, %v294, %v296
    %v298 = vrot.slane %v16, 2
    %v299 = vrot.slane %v17, 2
    %v300 = vsel %vm292, %v298, %v299
    %v301 = vrot.slane %v18, 2
    %v302 = vsel %vm292, %v299, %v301
    %v303 = vrot.slane %v19, 2
    %v304 = vrot.slane %v20, 2
    %v305 = vsel %vm292, %v303, %v304
    %v306 = vrot.slane %v21, 2
    %v307 = vsel %vm292, %v304, %v306
    %v308 = vrot.slane %v22, 2
    %v309 = vrot.slane %v23, 2
    %v310 = vsel %vm292, %v308, %v309
    %v311 = vrot.slane %v24, 2
    %v312 = vsel %vm292, %v309, %v311
    %v313 = vrot.slane %v25, 2
    %v314 = vrot.slane %v26, 2
    %v315 = vsel %vm292, %v313, %v314
    %v316 = vrot.slane %v27, 2
    %v317 = vsel %vm292, %v314, %v316
    %v318 = vrot.slane %v28, 2
    %v319 = vrot.slane %v29, 2
    %v320 = vsel %vm292, %v318, %v319
    %v321 = vrot.slane %v30, 2
    %v322 = vsel %vm292, %v319, %v321
    %v323 = vrot.slane %v31, 2
    %v324 = vrot.slane %v32, 2
    %v325 = vsel %vm292, %v323, %v324
    %v326 = vrot.slane %v33, 2
    %v327 = vsel %vm292, %v324, %v326
    %v328 = vrot.slane %v34, 2
    %v329 = vrot.slane %v35, 2
    %v330 = vsel %vm292, %v328, %v329
    %v331 = vrot.slane %v36, 2
    %v332 = vsel %vm292, %v329, %v331
    %v333 = vrot.slane %v37, 2
    %v334 = vrot.slane %v38, 2
    %v335 = vsel %vm292, %v333, %v334
    %v336 = vrot.slane %v39, 2
    %v337 = vsel %vm292, %v334, %v336
    %v338 = vrot.slane %v40, 2
    %v339 = vrot.slane %v41, 2
    %v340 = vsel %vm292, %v338, %v339
    %v341 = vrot.slane %v42, 2
    %v342 = vsel %vm292, %v339, %v341
    %v343 = vrot.slane %v43, 2
    %v344 = vrot.slane %v44, 2
    %v345 = vsel %vm292, %v343, %v344
    %v346 = vrot.slane %v45, 2
    %v347 = vsel %vm292, %v344, %v346
    %v348 = vrot.slane %v46, 2
    %v349 = vrot.slane %v47, 2
    %v350 = vsel %vm292, %v348, %v349
    %v351 = vrot.slane %v48, 2
    %v352 = vsel %vm292, %v349, %v351
    %v353 = vrot.slane %v49, 2
    %v354 = vrot.slane %v50, 2
    %v355 = vsel %vm292, %v353, %v354
    %v356 = vrot.slane %v51, 2
    %v357 = vsel %vm292, %v354, %v356
    %v358 = vrot.slane %v52, 2
    %v359 = vrot.slane %v53, 2
    %v360 = vsel %vm292, %v358, %v359
    %v361 = vrot.slane %v54, 2
    %v362 = vsel %vm292, %v359, %v361
    %v363 = vrot.slane %v55, 2
    %v364 = vrot.slane %v56, 2
    %v365 = vsel %vm292, %v363, %v364
    %v366 = vrot.slane %v57, 2
    %v367 = vsel %vm292, %v364, %v366
    %v368 = vrot.slane %v58, 2
    %v369 = vrot.slane %v59, 2
    %v370 = vsel %vm292, %v368, %v369
    %v371 = vrot.slane %v60, 2
    %v372 = vsel %vm292, %v369, %v371
    %373 = vrot.lane.b32.xlu0 %v295, 8
    %v374 = vpop.permute.xlu0 %373
    %375 = vrot.lane.b32.xlu0 %v297, 8
    %v376 = vpop.permute.xlu0 %375
    %377 = vrot.lane.b32.xlu0 %v300, 8
    %v378 = vpop.permute.xlu0 %377
    %379 = vrot.lane.b32.xlu0 %v302, 8
    %v380 = vpop.permute.xlu0 %379
    %381 = vrot.lane.b32.xlu0 %v305, 8
    %v382 = vpop.permute.xlu0 %381
    %383 = vrot.lane.b32.xlu0 %v307, 8
    %v384 = vpop.permute.xlu0 %383
    %385 = vrot.lane.b32.xlu0 %v310, 8
    %v386 = vpop.permute.xlu0 %385
    %387 = vrot.lane.b32.xlu0 %v312, 8
    %v388 = vpop.permute.xlu0 %387
    %389 = vrot.lane.b32.xlu0 %v315, 8
    %v390 = vpop.permute.xlu0 %389
    %391 = vrot.lane.b32.xlu0 %v317, 8
    %v392 = vpop.permute.xlu0 %391
    %393 = vrot.lane.b32.xlu0 %v320, 8
    %v394 = vpop.permute.xlu0 %393
    %395 = vrot.lane.b32.xlu0 %v322, 8
    %v396 = vpop.permute.xlu0 %395
    %397 = vrot.lane.b32.xlu0 %v325, 8
    %v398 = vpop.permute.xlu0 %397
    %399 = vrot.lane.b32.xlu0 %v327, 8
    %v400 = vpop.permute.xlu0 %399
    %401 = vrot.lane.b32.xlu0 %v330, 8
    %v402 = vpop.permute.xlu0 %401
    %403 = vrot.lane.b32.xlu0 %v332, 8
    %v404 = vpop.permute.xlu0 %403
    %405 = vrot.lane.b32.xlu0 %v335, 8
    %v406 = vpop.permute.xlu0 %405
    %407 = vrot.lane.b32.xlu0 %v337, 8
    %v408 = vpop.permute.xlu0 %407
    %409 = vrot.lane.b32.xlu0 %v340, 8
    %v410 = vpop.permute.xlu0 %409
    %411 = vrot.lane.b32.xlu0 %v342, 8
    %v412 = vpop.permute.xlu0 %411
    %413 = vrot.lane.b32.xlu0 %v345, 8
    %v414 = vpop.permute.xlu0 %413
    %415 = vrot.lane.b32.xlu0 %v347, 8
    %v416 = vpop.permute.xlu0 %415
    %417 = vrot.lane.b32.xlu0 %v350, 8
    %v418 = vpop.permute.xlu0 %417
    %419 = vrot.lane.b32.xlu0 %v352, 8
    %v420 = vpop.permute.xlu0 %419
    %421 = vrot.lane.b32.xlu0 %v355, 8
    %v422 = vpop.permute.xlu0 %421
    %423 = vrot.lane.b32.xlu0 %v357, 8
    %v424 = vpop.permute.xlu0 %423
    %425 = vrot.lane.b32.xlu0 %v360, 8
    %v426 = vpop.permute.xlu0 %425
    %427 = vrot.lane.b32.xlu0 %v362, 8
    %v428 = vpop.permute.xlu0 %427
    %429 = vrot.lane.b32.xlu0 %v365, 8
    %v430 = vpop.permute.xlu0 %429
    %431 = vrot.lane.b32.xlu0 %v367, 8
    %v432 = vpop.permute.xlu0 %431
    %433 = vrot.lane.b32.xlu0 %v370, 8
    %v434 = vpop.permute.xlu0 %433
    %435 = vrot.lane.b32.xlu0 %v372, 8
    %v436 = vpop.permute.xlu0 %435
    %471 = vrot.lane.b32.xlu0 %v16, 12
    %v472 = vpop.permute.xlu0 %471
    %473 = vrot.lane.b32.xlu0 %v17, 12
    %v474 = vpop.permute.xlu0 %473
    %475 = vrot.lane.b32.xlu0 %v19, 12
    %v476 = vpop.permute.xlu0 %475
    %477 = vrot.lane.b32.xlu0 %v20, 12
    %v478 = vpop.permute.xlu0 %477
    %479 = vrot.lane.b32.xlu0 %v22, 12
    %v480 = vpop.permute.xlu0 %479
    %481 = vrot.lane.b32.xlu0 %v23, 12
    %v482 = vpop.permute.xlu0 %481
    %483 = vrot.lane.b32.xlu0 %v25, 12
    %v484 = vpop.permute.xlu0 %483
    %485 = vrot.lane.b32.xlu0 %v26, 12
    %v486 = vpop.permute.xlu0 %485
    %487 = vrot.lane.b32.xlu0 %v28, 12
    %v488 = vpop.permute.xlu0 %487
    %489 = vrot.lane.b32.xlu0 %v29, 12
    %v490 = vpop.permute.xlu0 %489
    %491 = vrot.lane.b32.xlu0 %v31, 12
    %v492 = vpop.permute.xlu0 %491
    %493 = vrot.lane.b32.xlu0 %v32, 12
    %v494 = vpop.permute.xlu0 %493
    %495 = vrot.lane.b32.xlu0 %v34, 12
    %v496 = vpop.permute.xlu0 %495
    %497 = vrot.lane.b32.xlu0 %v35, 12
    %v498 = vpop.permute.xlu0 %497
    %499 = vrot.lane.b32.xlu0 %v37, 12
    %v500 = vpop.permute.xlu0 %499
    %501 = vrot.lane.b32.xlu0 %v38, 12
    %v502 = vpop.permute.xlu0 %501
    %503 = vrot.lane.b32.xlu0 %v40, 12
    %v504 = vpop.permute.xlu0 %503
    %505 = vrot.lane.b32.xlu0 %v41, 12
    %v506 = vpop.permute.xlu0 %505
    %507 = vrot.lane.b32.xlu0 %v43, 12
    %v508 = vpop.permute.xlu0 %507
    %509 = vrot.lane.b32.xlu0 %v44, 12
    %v510 = vpop.permute.xlu0 %509
    %511 = vrot.lane.b32.xlu0 %v46, 12
    %v512 = vpop.permute.xlu0 %511
    %513 = vrot.lane.b32.xlu0 %v47, 12
    %v514 = vpop.permute.xlu0 %513
    %515 = vrot.lane.b32.xlu0 %v49, 12
    %v516 = vpop.permute.xlu0 %515
    %517 = vrot.lane.b32.xlu0 %v50, 12
    %v518 = vpop.permute.xlu0 %517
    %519 = vrot.lane.b32.xlu0 %v52, 12
    %v520 = vpop.permute.xlu0 %519
    %521 = vrot.lane.b32.xlu0 %v53, 12
    %v522 = vpop.permute.xlu0 %521
    %523 = vrot.lane.b32.xlu0 %v55, 12
    %v524 = vpop.permute.xlu0 %523
    %525 = vrot.lane.b32.xlu0 %v56, 12
    %v526 = vpop.permute.xlu0 %525
    %527 = vrot.lane.b32.xlu0 %v58, 12
    %v528 = vpop.permute.xlu0 %527
    %529 = vrot.lane.b32.xlu0 %v59, 12
    %v530 = vpop.permute.xlu0 %529
    %531 = vrot.lane.b32.xlu0 %v61, 12
    %v532 = vpop.permute.xlu0 %531
    %533 = vrot.lane.b32.xlu0 %v62, 12
    %v534 = vpop.permute.xlu0 %533
    %v568 = vrot.slane %v61, 1
    %v569 = vrot.slane %v62, 1
    %v570 = vsel %vm115, %v568, %v569
    %v571 = vrot.slane %v63, 1
    %v572 = vsel %vm115, %v569, %v571
    %573 = vrot.lane.b32.xlu0 %v123, 16
    %v574 = vpop.permute.xlu0 %573
    %575 = vrot.lane.b32.xlu0 %v125, 16
    %v576 = vpop.permute.xlu0 %575
    %577 = vrot.lane.b32.xlu0 %v128, 16
    %v578 = vpop.permute.xlu0 %577
    %579 = vrot.lane.b32.xlu0 %v130, 16
    %v580 = vpop.permute.xlu0 %579
    %581 = vrot.lane.b32.xlu0 %v133, 16
    %v582 = vpop.permute.xlu0 %581
    %583 = vrot.lane.b32.xlu0 %v135, 16
    %v584 = vpop.permute.xlu0 %583
    %585 = vrot.lane.b32.xlu0 %v138, 16
    %v586 = vpop.permute.xlu0 %585
    %587 = vrot.lane.b32.xlu0 %v140, 16
    %v588 = vpop.permute.xlu0 %587
    %589 = vrot.lane.b32.xlu0 %v143, 16
    %v590 = vpop.permute.xlu0 %589
    %591 = vrot.lane.b32.xlu0 %v145, 16
    %v592 = vpop.permute.xlu0 %591
    %593 = vrot.lane.b32.xlu0 %v148, 16
    %v594 = vpop.permute.xlu0 %593
    %595 = vrot.lane.b32.xlu0 %v150, 16
    %v596 = vpop.permute.xlu0 %595
    %597 = vrot.lane.b32.xlu0 %v153, 16
    %v598 = vpop.permute.xlu0 %597
    %599 = vrot.lane.b32.xlu0 %v155, 16
    %v600 = vpop.permute.xlu0 %599
    %601 = vrot.lane.b32.xlu0 %v158, 16
    %v602 = vpop.permute.xlu0 %601
    %603 = vrot.lane.b32.xlu0 %v160, 16
    %v604 = vpop.permute.xlu0 %603
    %605 = vrot.lane.b32.xlu0 %v163, 16
    %v606 = vpop.permute.xlu0 %605
    %607 = vrot.lane.b32.xlu0 %v165, 16
    %v608 = vpop.permute.xlu0 %607
    %609 = vrot.lane.b32.xlu0 %v168, 16
    %v610 = vpop.permute.xlu0 %609
    %611 = vrot.lane.b32.xlu0 %v170, 16
    %v612 = vpop.permute.xlu0 %611
    %613 = vrot.lane.b32.xlu0 %v173, 16
    %v614 = vpop.permute.xlu0 %613
    %615 = vrot.lane.b32.xlu0 %v175, 16
    %v616 = vpop.permute.xlu0 %615
    %617 = vrot.lane.b32.xlu0 %v178, 16
    %v618 = vpop.permute.xlu0 %617
    %619 = vrot.lane.b32.xlu0 %v180, 16
    %v620 = vpop.permute.xlu0 %619
    %621 = vrot.lane.b32.xlu0 %v183, 16
    %v622 = vpop.permute.xlu0 %621
    %623 = vrot.lane.b32.xlu0 %v185, 16
    %v624 = vpop.permute.xlu0 %623
    %625 = vrot.lane.b32.xlu0 %v188, 16
    %v626 = vpop.permute.xlu0 %625
    %627 = vrot.lane.b32.xlu0 %v190, 16
    %v628 = vpop.permute.xlu0 %627
    %629 = vrot.lane.b32.xlu0 %v193, 16
    %v630 = vpop.permute.xlu0 %629
    %631 = vrot.lane.b32.xlu0 %v195, 16
    %v632 = vpop.permute.xlu0 %631
    %633 = vrot.lane.b32.xlu0 %v570, 16
    %v634 = vpop.permute.xlu0 %633
    %635 = vrot.lane.b32.xlu0 %v572, 16
    %v636 = vpop.permute.xlu0 %635
    %v669 = vrot.slane %v61, 2
    %v670 = vrot.slane %v62, 2
    %v671 = vsel %vm292, %v669, %v670
    %v672 = vrot.slane %v63, 2
    %v673 = vsel %vm292, %v670, %v672
    %674 = vrot.lane.b32.xlu0 %v300, 20
    %v675 = vpop.permute.xlu0 %674
    %676 = vrot.lane.b32.xlu0 %v302, 20
    %v677 = vpop.permute.xlu0 %676
    %678 = vrot.lane.b32.xlu0 %v305, 20
    %v679 = vpop.permute.xlu0 %678
    %680 = vrot.lane.b32.xlu0 %v307, 20
    %v681 = vpop.permute.xlu0 %680
    %682 = vrot.lane.b32.xlu0 %v310, 20
    %v683 = vpop.permute.xlu0 %682
    %684 = vrot.lane.b32.xlu0 %v312, 20
    %v685 = vpop.permute.xlu0 %684
    %686 = vrot.lane.b32.xlu0 %v315, 20
    %v687 = vpop.permute.xlu0 %686
    %688 = vrot.lane.b32.xlu0 %v317, 20
    %v689 = vpop.permute.xlu0 %688
    %690 = vrot.lane.b32.xlu0 %v320, 20
    %v691 = vpop.permute.xlu0 %690
    %692 = vrot.lane.b32.xlu0 %v322, 20
    %v693 = vpop.permute.xlu0 %692
    %694 = vrot.lane.b32.xlu0 %v325, 20
    %v695 = vpop.permute.xlu0 %694
    %696 = vrot.lane.b32.xlu0 %v327, 20
    %v697 = vpop.permute.xlu0 %696
    %698 = vrot.lane.b32.xlu0 %v330, 20
    %v699 = vpop.permute.xlu0 %698
    %700 = vrot.lane.b32.xlu0 %v332, 20
    %v701 = vpop.permute.xlu0 %700
    %702 = vrot.lane.b32.xlu0 %v335, 20
    %v703 = vpop.permute.xlu0 %702
    %704 = vrot.lane.b32.xlu0 %v337, 20
    %v705 = vpop.permute.xlu0 %704
    %706 = vrot.lane.b32.xlu0 %v340, 20
    %v707 = vpop.permute.xlu0 %706
    %708 = vrot.lane.b32.xlu0 %v342, 20
    %v709 = vpop.permute.xlu0 %708
    %710 = vrot.lane.b32.xlu0 %v345, 20
    %v711 = vpop.permute.xlu0 %710
    %712 = vrot.lane.b32.xlu0 %v347, 20
    %v713 = vpop.permute.xlu0 %712
    %714 = vrot.lane.b32.xlu0 %v350, 20
    %v715 = vpop.permute.xlu0 %714
    %716 = vrot.lane.b32.xlu0 %v352, 20
    %v717 = vpop.permute.xlu0 %716
    %718 = vrot.lane.b32.xlu0 %v355, 20
    %v719 = vpop.permute.xlu0 %718
    %720 = vrot.lane.b32.xlu0 %v357, 20
    %v721 = vpop.permute.xlu0 %720
    %722 = vrot.lane.b32.xlu0 %v360, 20
    %v723 = vpop.permute.xlu0 %722
    %724 = vrot.lane.b32.xlu0 %v362, 20
    %v725 = vpop.permute.xlu0 %724
    %726 = vrot.lane.b32.xlu0 %v365, 20
    %v727 = vpop.permute.xlu0 %726
    %728 = vrot.lane.b32.xlu0 %v367, 20
    %v729 = vpop.permute.xlu0 %728
    %730 = vrot.lane.b32.xlu0 %v370, 20
    %v731 = vpop.permute.xlu0 %730
    %732 = vrot.lane.b32.xlu0 %v372, 20
    %v733 = vpop.permute.xlu0 %732
    %734 = vrot.lane.b32.xlu0 %v671, 20
    %v735 = vpop.permute.xlu0 %734
    %736 = vrot.lane.b32.xlu0 %v673, 20
    %v737 = vpop.permute.xlu0 %736
    %772 = vrot.lane.b32.xlu0 %v19, 24
    %v773 = vpop.permute.xlu0 %772
    %774 = vrot.lane.b32.xlu0 %v20, 24
    %v775 = vpop.permute.xlu0 %774
    %776 = vrot.lane.b32.xlu0 %v22, 24
    %v777 = vpop.permute.xlu0 %776
    %778 = vrot.lane.b32.xlu0 %v23, 24
    %v779 = vpop.permute.xlu0 %778
    %780 = vrot.lane.b32.xlu0 %v25, 24
    %v781 = vpop.permute.xlu0 %780
    %782 = vrot.lane.b32.xlu0 %v26, 24
    %v783 = vpop.permute.xlu0 %782
    %784 = vrot.lane.b32.xlu0 %v28, 24
    %v785 = vpop.permute.xlu0 %784
    %786 = vrot.lane.b32.xlu0 %v29, 24
    %v787 = vpop.permute.xlu0 %786
    %788 = vrot.lane.b32.xlu0 %v31, 24
    %v789 = vpop.permute.xlu0 %788
    %790 = vrot.lane.b32.xlu0 %v32, 24
    %v791 = vpop.permute.xlu0 %790
    %792 = vrot.lane.b32.xlu0 %v34, 24
    %v793 = vpop.permute.xlu0 %792
    %794 = vrot.lane.b32.xlu0 %v35, 24
    %v795 = vpop.permute.xlu0 %794
    %796 = vrot.lane.b32.xlu0 %v37, 24
    %v797 = vpop.permute.xlu0 %796
    %798 = vrot.lane.b32.xlu0 %v38, 24
    %v799 = vpop.permute.xlu0 %798
    %800 = vrot.lane.b32.xlu0 %v40, 24
    %v801 = vpop.permute.xlu0 %800
    %802 = vrot.lane.b32.xlu0 %v41, 24
    %v803 = vpop.permute.xlu0 %802
    %804 = vrot.lane.b32.xlu0 %v43, 24
    %v805 = vpop.permute.xlu0 %804
    %806 = vrot.lane.b32.xlu0 %v44, 24
    %v807 = vpop.permute.xlu0 %806
    %808 = vrot.lane.b32.xlu0 %v46, 24
    %v809 = vpop.permute.xlu0 %808
    %810 = vrot.lane.b32.xlu0 %v47, 24
    %v811 = vpop.permute.xlu0 %810
    %812 = vrot.lane.b32.xlu0 %v49, 24
    %v813 = vpop.permute.xlu0 %812
    %814 = vrot.lane.b32.xlu0 %v50, 24
    %v815 = vpop.permute.xlu0 %814
    %816 = vrot.lane.b32.xlu0 %v52, 24
    %v817 = vpop.permute.xlu0 %816
    %818 = vrot.lane.b32.xlu0 %v53, 24
    %v819 = vpop.permute.xlu0 %818
    %820 = vrot.lane.b32.xlu0 %v55, 24
    %v821 = vpop.permute.xlu0 %820
    %822 = vrot.lane.b32.xlu0 %v56, 24
    %v823 = vpop.permute.xlu0 %822
    %824 = vrot.lane.b32.xlu0 %v58, 24
    %v825 = vpop.permute.xlu0 %824
    %826 = vrot.lane.b32.xlu0 %v59, 24
    %v827 = vpop.permute.xlu0 %826
    %828 = vrot.lane.b32.xlu0 %v61, 24
    %v829 = vpop.permute.xlu0 %828
    %830 = vrot.lane.b32.xlu0 %v62, 24
    %v831 = vpop.permute.xlu0 %830
    %832 = vrot.lane.b32.xlu0 %v64, 24
    %v833 = vpop.permute.xlu0 %832
    %834 = vrot.lane.b32.xlu0 %v65, 24
    %v835 = vpop.permute.xlu0 %834
    %v869 = vrot.slane %v64, 1
    %v870 = vrot.slane %v65, 1
    %v871 = vsel %vm115, %v869, %v870
    %v872 = vrot.slane %v66, 1
    %v873 = vsel %vm115, %v870, %v872
    %874 = vrot.lane.b32.xlu0 %v128, 28
    %v875 = vpop.permute.xlu0 %874
    %876 = vrot.lane.b32.xlu0 %v130, 28
    %v877 = vpop.permute.xlu0 %876
    %878 = vrot.lane.b32.xlu0 %v133, 28
    %v879 = vpop.permute.xlu0 %878
    %880 = vrot.lane.b32.xlu0 %v135, 28
    %v881 = vpop.permute.xlu0 %880
    %882 = vrot.lane.b32.xlu0 %v138, 28
    %v883 = vpop.permute.xlu0 %882
    %884 = vrot.lane.b32.xlu0 %v140, 28
    %v885 = vpop.permute.xlu0 %884
    %886 = vrot.lane.b32.xlu0 %v143, 28
    %v887 = vpop.permute.xlu0 %886
    %888 = vrot.lane.b32.xlu0 %v145, 28
    %v889 = vpop.permute.xlu0 %888
    %890 = vrot.lane.b32.xlu0 %v148, 28
    %v891 = vpop.permute.xlu0 %890
    %892 = vrot.lane.b32.xlu0 %v150, 28
    %v893 = vpop.permute.xlu0 %892
    %894 = vrot.lane.b32.xlu0 %v153, 28
    %v895 = vpop.permute.xlu0 %894
    %896 = vrot.lane.b32.xlu0 %v155, 28
    %v897 = vpop.permute.xlu0 %896
    %898 = vrot.lane.b32.xlu0 %v158, 28
    %v899 = vpop.permute.xlu0 %898
    %900 = vrot.lane.b32.xlu0 %v160, 28
    %v901 = vpop.permute.xlu0 %900
    %902 = vrot.lane.b32.xlu0 %v163, 28
    %v903 = vpop.permute.xlu0 %902
    %904 = vrot.lane.b32.xlu0 %v165, 28
    %v905 = vpop.permute.xlu0 %904
    %906 = vrot.lane.b32.xlu0 %v168, 28
    %v907 = vpop.permute.xlu0 %906
    %908 = vrot.lane.b32.xlu0 %v170, 28
    %v909 = vpop.permute.xlu0 %908
    %910 = vrot.lane.b32.xlu0 %v173, 28
    %v911 = vpop.permute.xlu0 %910
    %912 = vrot.lane.b32.xlu0 %v175, 28
    %v913 = vpop.permute.xlu0 %912
    %914 = vrot.lane.b32.xlu0 %v178, 28
    %v915 = vpop.permute.xlu0 %914
    %916 = vrot.lane.b32.xlu0 %v180, 28
    %v917 = vpop.permute.xlu0 %916
    %918 = vrot.lane.b32.xlu0 %v183, 28
    %v919 = vpop.permute.xlu0 %918
    %920 = vrot.lane.b32.xlu0 %v185, 28
    %v921 = vpop.permute.xlu0 %920
    %922 = vrot.lane.b32.xlu0 %v188, 28
    %v923 = vpop.permute.xlu0 %922
    %924 = vrot.lane.b32.xlu0 %v190, 28
    %v925 = vpop.permute.xlu0 %924
    %926 = vrot.lane.b32.xlu0 %v193, 28
    %v927 = vpop.permute.xlu0 %926
    %928 = vrot.lane.b32.xlu0 %v195, 28
    %v929 = vpop.permute.xlu0 %928
    %930 = vrot.lane.b32.xlu0 %v570, 28
    %v931 = vpop.permute.xlu0 %930
    %932 = vrot.lane.b32.xlu0 %v572, 28
    %v933 = vpop.permute.xlu0 %932
    %934 = vrot.lane.b32.xlu0 %v871, 28
    %v935 = vpop.permute.xlu0 %934
    %936 = vrot.lane.b32.xlu0 %v873, 28
    %v937 = vpop.permute.xlu0 %936
    %v970 = vrot.slane %v64, 2
    %v971 = vrot.slane %v65, 2
    %v972 = vsel %vm292, %v970, %v971
    %v973 = vrot.slane %v66, 2
    %v974 = vsel %vm292, %v971, %v973
    %975 = vrot.lane.b32.xlu0 %v305, 32
    %v976 = vpop.permute.xlu0 %975
    %977 = vrot.lane.b32.xlu0 %v307, 32
    %v978 = vpop.permute.xlu0 %977
    %979 = vrot.lane.b32.xlu0 %v310, 32
    %v980 = vpop.permute.xlu0 %979
    %981 = vrot.lane.b32.xlu0 %v312, 32
    %v982 = vpop.permute.xlu0 %981
    %983 = vrot.lane.b32.xlu0 %v315, 32
    %v984 = vpop.permute.xlu0 %983
    %985 = vrot.lane.b32.xlu0 %v317, 32
    %v986 = vpop.permute.xlu0 %985
    %987 = vrot.lane.b32.xlu0 %v320, 32
    %v988 = vpop.permute.xlu0 %987
    %989 = vrot.lane.b32.xlu0 %v322, 32
    %v990 = vpop.permute.xlu0 %989
    %991 = vrot.lane.b32.xlu0 %v325, 32
    %v992 = vpop.permute.xlu0 %991
    %993 = vrot.lane.b32.xlu0 %v327, 32
    %v994 = vpop.permute.xlu0 %993
    %995 = vrot.lane.b32.xlu0 %v330, 32
    %v996 = vpop.permute.xlu0 %995
    %997 = vrot.lane.b32.xlu0 %v332, 32
    %v998 = vpop.permute.xlu0 %997
    %999 = vrot.lane.b32.xlu0 %v335, 32
    %v1000 = vpop.permute.xlu0 %999
    %1001 = vrot.lane.b32.xlu0 %v337, 32
    %v1002 = vpop.permute.xlu0 %1001
    %1003 = vrot.lane.b32.xlu0 %v340, 32
    %v1004 = vpop.permute.xlu0 %1003
    %1005 = vrot.lane.b32.xlu0 %v342, 32
    %v1006 = vpop.permute.xlu0 %1005
    %1007 = vrot.lane.b32.xlu0 %v345, 32
    %v1008 = vpop.permute.xlu0 %1007
    %1009 = vrot.lane.b32.xlu0 %v347, 32
    %v1010 = vpop.permute.xlu0 %1009
    %1011 = vrot.lane.b32.xlu0 %v350, 32
    %v1012 = vpop.permute.xlu0 %1011
    %1013 = vrot.lane.b32.xlu0 %v352, 32
    %v1014 = vpop.permute.xlu0 %1013
    %1015 = vrot.lane.b32.xlu0 %v355, 32
    %v1016 = vpop.permute.xlu0 %1015
    %1017 = vrot.lane.b32.xlu0 %v357, 32
    %v1018 = vpop.permute.xlu0 %1017
    %1019 = vrot.lane.b32.xlu0 %v360, 32
    %v1020 = vpop.permute.xlu0 %1019
    %1021 = vrot.lane.b32.xlu0 %v362, 32
    %v1022 = vpop.permute.xlu0 %1021
    %1023 = vrot.lane.b32.xlu0 %v365, 32
    %v1024 = vpop.permute.xlu0 %1023
    %1025 = vrot.lane.b32.xlu0 %v367, 32
    %v1026 = vpop.permute.xlu0 %1025
    %1027 = vrot.lane.b32.xlu0 %v370, 32
    %v1028 = vpop.permute.xlu0 %1027
    %1029 = vrot.lane.b32.xlu0 %v372, 32
    %v1030 = vpop.permute.xlu0 %1029
    %1031 = vrot.lane.b32.xlu0 %v671, 32
    %v1032 = vpop.permute.xlu0 %1031
    %1033 = vrot.lane.b32.xlu0 %v673, 32
    %v1034 = vpop.permute.xlu0 %1033
    %1035 = vrot.lane.b32.xlu0 %v972, 32
    %v1036 = vpop.permute.xlu0 %1035
    %1037 = vrot.lane.b32.xlu0 %v974, 32
    %v1038 = vpop.permute.xlu0 %1037
    %vm1071 = vcmask 31744
    %v1072 = vsel %vm1071, %v13, %v197
    %v1073 = vsel %vm1071, %v14, %v199
    %v1074 = vsel %vm1071, %v16, %v201
    %v1075 = vsel %vm1071, %v17, %v203
    %v1076 = vsel %vm1071, %v19, %v205
    %v1077 = vsel %vm1071, %v20, %v207
    %v1078 = vsel %vm1071, %v22, %v209
    %v1079 = vsel %vm1071, %v23, %v211
    %v1080 = vsel %vm1071, %v25, %v213
    %v1081 = vsel %vm1071, %v26, %v215
    %v1082 = vsel %vm1071, %v28, %v217
    %v1083 = vsel %vm1071, %v29, %v219
    %v1084 = vsel %vm1071, %v31, %v221
    %v1085 = vsel %vm1071, %v32, %v223
    %v1086 = vsel %vm1071, %v34, %v225
    %v1087 = vsel %vm1071, %v35, %v227
    %v1088 = vsel %vm1071, %v37, %v229
    %v1089 = vsel %vm1071, %v38, %v231
    %v1090 = vsel %vm1071, %v40, %v233
    %v1091 = vsel %vm1071, %v41, %v235
    %v1092 = vsel %vm1071, %v43, %v237
    %v1093 = vsel %vm1071, %v44, %v239
    %v1094 = vsel %vm1071, %v46, %v241
    %v1095 = vsel %vm1071, %v47, %v243
    %v1096 = vsel %vm1071, %v49, %v245
    %v1097 = vsel %vm1071, %v50, %v247
    %v1098 = vsel %vm1071, %v52, %v249
    %v1099 = vsel %vm1071, %v53, %v251
    %v1100 = vsel %vm1071, %v55, %v253
    %v1101 = vsel %vm1071, %v56, %v255
    %v1102 = vsel %vm1071, %v58, %v257
    %v1103 = vsel %vm1071, %v59, %v259
    %vm1104 = vcmask 64512
    %v1105 = vsel %vm1104, %v1072, %v374
    %v1106 = vsel %vm1104, %v1073, %v376
    %v1107 = vsel %vm1104, %v1074, %v378
    %v1108 = vsel %vm1104, %v1075, %v380
    %v1109 = vsel %vm1104, %v1076, %v382
    %v1110 = vsel %vm1104, %v1077, %v384
    %v1111 = vsel %vm1104, %v1078, %v386
    %v1112 = vsel %vm1104, %v1079, %v388
    %v1113 = vsel %vm1104, %v1080, %v390
    %v1114 = vsel %vm1104, %v1081, %v392
    %v1115 = vsel %vm1104, %v1082, %v394
    %v1116 = vsel %vm1104, %v1083, %v396
    %v1117 = vsel %vm1104, %v1084, %v398
    %v1118 = vsel %vm1104, %v1085, %v400
    %v1119 = vsel %vm1104, %v1086, %v402
    %v1120 = vsel %vm1104, %v1087, %v404
    %v1121 = vsel %vm1104, %v1088, %v406
    %v1122 = vsel %vm1104, %v1089, %v408
    %v1123 = vsel %vm1104, %v1090, %v410
    %v1124 = vsel %vm1104, %v1091, %v412
    %v1125 = vsel %vm1104, %v1092, %v414
    %v1126 = vsel %vm1104, %v1093, %v416
    %v1127 = vsel %vm1104, %v1094, %v418
    %v1128 = vsel %vm1104, %v1095, %v420
    %v1129 = vsel %vm1104, %v1096, %v422
    %v1130 = vsel %vm1104, %v1097, %v424
    %v1131 = vsel %vm1104, %v1098, %v426
    %v1132 = vsel %vm1104, %v1099, %v428
    %v1133 = vsel %vm1104, %v1100, %v430
    %v1134 = vsel %vm1104, %v1101, %v432
    %v1135 = vsel %vm1104, %v1102, %v434
    %v1136 = vsel %vm1104, %v1103, %v436
    %vm1137 = vcmask 97280
    %v1138 = vsel %vm1137, %v1105, %v472
    %v1139 = vsel %vm1137, %v1106, %v474
    %v1140 = vsel %vm1137, %v1107, %v476
    %v1141 = vsel %vm1137, %v1108, %v478
    %v1142 = vsel %vm1137, %v1109, %v480
    %v1143 = vsel %vm1137, %v1110, %v482
    %v1144 = vsel %vm1137, %v1111, %v484
    %v1145 = vsel %vm1137, %v1112, %v486
    %v1146 = vsel %vm1137, %v1113, %v488
    %v1147 = vsel %vm1137, %v1114, %v490
    %v1148 = vsel %vm1137, %v1115, %v492
    %v1149 = vsel %vm1137, %v1116, %v494
    %v1150 = vsel %vm1137, %v1117, %v496
    %v1151 = vsel %vm1137, %v1118, %v498
    %v1152 = vsel %vm1137, %v1119, %v500
    %v1153 = vsel %vm1137, %v1120, %v502
    %v1154 = vsel %vm1137, %v1121, %v504
    %v1155 = vsel %vm1137, %v1122, %v506
    %v1156 = vsel %vm1137, %v1123, %v508
    %v1157 = vsel %vm1137, %v1124, %v510
    %v1158 = vsel %vm1137, %v1125, %v512
    %v1159 = vsel %vm1137, %v1126, %v514
    %v1160 = vsel %vm1137, %v1127, %v516
    %v1161 = vsel %vm1137, %v1128, %v518
    %v1162 = vsel %vm1137, %v1129, %v520
    %v1163 = vsel %vm1137, %v1130, %v522
    %v1164 = vsel %vm1137, %v1131, %v524
    %v1165 = vsel %vm1137, %v1132, %v526
    %v1166 = vsel %vm1137, %v1133, %v528
    %v1167 = vsel %vm1137, %v1134, %v530
    %v1168 = vsel %vm1137, %v1135, %v532
    %v1169 = vsel %vm1137, %v1136, %v534
    %vm1170 = vcmask 130048
    %v1171 = vsel %vm1170, %v1138, %v574
    %v1172 = vsel %vm1170, %v1139, %v576
    %v1173 = vsel %vm1170, %v1140, %v578
    %v1174 = vsel %vm1170, %v1141, %v580
    %v1175 = vsel %vm1170, %v1142, %v582
    %v1176 = vsel %vm1170, %v1143, %v584
    %v1177 = vsel %vm1170, %v1144, %v586
    %v1178 = vsel %vm1170, %v1145, %v588
    %v1179 = vsel %vm1170, %v1146, %v590
    %v1180 = vsel %vm1170, %v1147, %v592
    %v1181 = vsel %vm1170, %v1148, %v594
    %v1182 = vsel %vm1170, %v1149, %v596
    %v1183 = vsel %vm1170, %v1150, %v598
    %v1184 = vsel %vm1170, %v1151, %v600
    %v1185 = vsel %vm1170, %v1152, %v602
    %v1186 = vsel %vm1170, %v1153, %v604
    %v1187 = vsel %vm1170, %v1154, %v606
    %v1188 = vsel %vm1170, %v1155, %v608
    %v1189 = vsel %vm1170, %v1156, %v610
    %v1190 = vsel %vm1170, %v1157, %v612
    %v1191 = vsel %vm1170, %v1158, %v614
    %v1192 = vsel %vm1170, %v1159, %v616
    %v1193 = vsel %vm1170, %v1160, %v618
    %v1194 = vsel %vm1170, %v1161, %v620
    %v1195 = vsel %vm1170, %v1162, %v622
    %v1196 = vsel %vm1170, %v1163, %v624
    %v1197 = vsel %vm1170, %v1164, %v626
    %v1198 = vsel %vm1170, %v1165, %v628
    %v1199 = vsel %vm1170, %v1166, %v630
    %v1200 = vsel %vm1170, %v1167, %v632
    %v1201 = vsel %vm1170, %v1168, %v634
    %v1202 = vsel %vm1170, %v1169, %v636
    %vm1203 = vcmask 162816
    %v1204 = vsel %vm1203, %v1171, %v675
    %v1205 = vsel %vm1203, %v1172, %v677
    %v1206 = vsel %vm1203, %v1173, %v679
    %v1207 = vsel %vm1203, %v1174, %v681
    %v1208 = vsel %vm1203, %v1175, %v683
    %v1209 = vsel %vm1203, %v1176, %v685
    %v1210 = vsel %vm1203, %v1177, %v687
    %v1211 = vsel %vm1203, %v1178, %v689
    %v1212 = vsel %vm1203, %v1179, %v691
    %v1213 = vsel %vm1203, %v1180, %v693
    %v1214 = vsel %vm1203, %v1181, %v695
    %v1215 = vsel %vm1203, %v1182, %v697
    %v1216 = vsel %vm1203, %v1183, %v699
    %v1217 = vsel %vm1203, %v1184, %v701
    %v1218 = vsel %vm1203, %v1185, %v703
    %v1219 = vsel %vm1203, %v1186, %v705
    %v1220 = vsel %vm1203, %v1187, %v707
    %v1221 = vsel %vm1203, %v1188, %v709
    %v1222 = vsel %vm1203, %v1189, %v711
    %v1223 = vsel %vm1203, %v1190, %v713
    %v1224 = vsel %vm1203, %v1191, %v715
    %v1225 = vsel %vm1203, %v1192, %v717
    %v1226 = vsel %vm1203, %v1193, %v719
    %v1227 = vsel %vm1203, %v1194, %v721
    %v1228 = vsel %vm1203, %v1195, %v723
    %v1229 = vsel %vm1203, %v1196, %v725
    %v1230 = vsel %vm1203, %v1197, %v727
    %v1231 = vsel %vm1203, %v1198, %v729
    %v1232 = vsel %vm1203, %v1199, %v731
    %v1233 = vsel %vm1203, %v1200, %v733
    %v1234 = vsel %vm1203, %v1201, %v735
    %v1235 = vsel %vm1203, %v1202, %v737
    %vm1236 = vcmask 195584
    %v1237 = vsel %vm1236, %v1204, %v773
    %v1238 = vsel %vm1236, %v1205, %v775
    %v1239 = vsel %vm1236, %v1206, %v777
    %v1240 = vsel %vm1236, %v1207, %v779
    %v1241 = vsel %vm1236, %v1208, %v781
    %v1242 = vsel %vm1236, %v1209, %v783
    %v1243 = vsel %vm1236, %v1210, %v785
    %v1244 = vsel %vm1236, %v1211, %v787
    %v1245 = vsel %vm1236, %v1212, %v789
    %v1246 = vsel %vm1236, %v1213, %v791
    %v1247 = vsel %vm1236, %v1214, %v793
    %v1248 = vsel %vm1236, %v1215, %v795
    %v1249 = vsel %vm1236, %v1216, %v797
    %v1250 = vsel %vm1236, %v1217, %v799
    %v1251 = vsel %vm1236, %v1218, %v801
    %v1252 = vsel %vm1236, %v1219, %v803
    %v1253 = vsel %vm1236, %v1220, %v805
    %v1254 = vsel %vm1236, %v1221, %v807
    %v1255 = vsel %vm1236, %v1222, %v809
    %v1256 = vsel %vm1236, %v1223, %v811
    %v1257 = vsel %vm1236, %v1224, %v813
    %v1258 = vsel %vm1236, %v1225, %v815
    %v1259 = vsel %vm1236, %v1226, %v817
    %v1260 = vsel %vm1236, %v1227, %v819
    %v1261 = vsel %vm1236, %v1228, %v821
    %v1262 = vsel %vm1236, %v1229, %v823
    %v1263 = vsel %vm1236, %v1230, %v825
    %v1264 = vsel %vm1236, %v1231, %v827
    %v1265 = vsel %vm1236, %v1232, %v829
    %v1266 = vsel %vm1236, %v1233, %v831
    %v1267 = vsel %vm1236, %v1234, %v833
    %v1268 = vsel %vm1236, %v1235, %v835
    %vm1269 = vcmask 228352
    %v1270 = vsel %vm1269, %v1237, %v875
    %v1271 = vsel %vm1269, %v1238, %v877
    %v1272 = vsel %vm1269, %v1239, %v879
    %v1273 = vsel %vm1269, %v1240, %v881
    %v1274 = vsel %vm1269, %v1241, %v883
    %v1275 = vsel %vm1269, %v1242, %v885
    %v1276 = vsel %vm1269, %v1243, %v887
    %v1277 = vsel %vm1269, %v1244, %v889
    %v1278 = vsel %vm1269, %v1245, %v891
    %v1279 = vsel %vm1269, %v1246, %v893
    %v1280 = vsel %vm1269, %v1247, %v895
    %v1281 = vsel %vm1269, %v1248, %v897
    %v1282 = vsel %vm1269, %v1249, %v899
    %v1283 = vsel %vm1269, %v1250, %v901
    %v1284 = vsel %vm1269, %v1251, %v903
    %v1285 = vsel %vm1269, %v1252, %v905
    %v1286 = vsel %vm1269, %v1253, %v907
    %v1287 = vsel %vm1269, %v1254, %v909
    %v1288 = vsel %vm1269, %v1255, %v911
    %v1289 = vsel %vm1269, %v1256, %v913
    %v1290 = vsel %vm1269, %v1257, %v915
    %v1291 = vsel %vm1269, %v1258, %v917
    %v1292 = vsel %vm1269, %v1259, %v919
    %v1293 = vsel %vm1269, %v1260, %v921
    %v1294 = vsel %vm1269, %v1261, %v923
    %v1295 = vsel %vm1269, %v1262, %v925
    %v1296 = vsel %vm1269, %v1263, %v927
    %v1297 = vsel %vm1269, %v1264, %v929
    %v1298 = vsel %vm1269, %v1265, %v931
    %v1299 = vsel %vm1269, %v1266, %v933
    %v1300 = vsel %vm1269, %v1267, %v935
    %v1301 = vsel %vm1269, %v1268, %v937
    %vm1302 = vcmask 261120
    %v1303 = vsel %vm1302, %v1270, %v976
    %v1304 = vsel %vm1302, %v1271, %v978
    %v1305 = vsel %vm1302, %v1272, %v980
    %v1306 = vsel %vm1302, %v1273, %v982
    %v1307 = vsel %vm1302, %v1274, %v984
    %v1308 = vsel %vm1302, %v1275, %v986
    %v1309 = vsel %vm1302, %v1276, %v988
    %v1310 = vsel %vm1302, %v1277, %v990
    %v1311 = vsel %vm1302, %v1278, %v992
    %v1312 = vsel %vm1302, %v1279, %v994
    %v1313 = vsel %vm1302, %v1280, %v996
    %v1314 = vsel %vm1302, %v1281, %v998
    %v1315 = vsel %vm1302, %v1282, %v1000
    %v1316 = vsel %vm1302, %v1283, %v1002
    %v1317 = vsel %vm1302, %v1284, %v1004
    %v1318 = vsel %vm1302, %v1285, %v1006
    %v1319 = vsel %vm1302, %v1286, %v1008
    %v1320 = vsel %vm1302, %v1287, %v1010
    %v1321 = vsel %vm1302, %v1288, %v1012
    %v1322 = vsel %vm1302, %v1289, %v1014
    %v1323 = vsel %vm1302, %v1290, %v1016
    %v1324 = vsel %vm1302, %v1291, %v1018
    %v1325 = vsel %vm1302, %v1292, %v1020
    %v1326 = vsel %vm1302, %v1293, %v1022
    %v1327 = vsel %vm1302, %v1294, %v1024
    %v1328 = vsel %vm1302, %v1295, %v1026
    %v1329 = vsel %vm1302, %v1296, %v1028
    %v1330 = vsel %vm1302, %v1297, %v1030
    %v1331 = vsel %vm1302, %v1298, %v1032
    %v1332 = vsel %vm1302, %v1299, %v1034
    %v1333 = vsel %vm1302, %v1300, %v1036
    %v1334 = vsel %vm1302, %v1301, %v1038
    %vm1335 = vcmask 293888
    %v1336 = vsel %vm1335, %v1303, 0.0
    %v1337 = vsel %vm1335, %v1304, 0.0
    %v1338 = vsel %vm1335, %v1305, 0.0
    %v1339 = vsel %vm1335, %v1306, 0.0
    %v1340 = vsel %vm1335, %v1307, 0.0
    %v1341 = vsel %vm1335, %v1308, 0.0
    %v1342 = vsel %vm1335, %v1309, 0.0
    %v1343 = vsel %vm1335, %v1310, 0.0
    %v1344 = vsel %vm1335, %v1311, 0.0
    %v1345 = vsel %vm1335, %v1312, 0.0
    %v1346 = vsel %vm1335, %v1313, 0.0
    %v1347 = vsel %vm1335, %v1314, 0.0
    %v1348 = vsel %vm1335, %v1315, 0.0
    %v1349 = vsel %vm1335, %v1316, 0.0
    %v1350 = vsel %vm1335, %v1317, 0.0
    %v1351 = vsel %vm1335, %v1318, 0.0
    %v1352 = vsel %vm1335, %v1319, 0.0
    %v1353 = vsel %vm1335, %v1320, 0.0
    %v1354 = vsel %vm1335, %v1321, 0.0
    %v1355 = vsel %vm1335, %v1322, 0.0
    %v1356 = vsel %vm1335, %v1323, 0.0
    %v1357 = vsel %vm1335, %v1324, 0.0
    %v1358 = vsel %vm1335, %v1325, 0.0
    %v1359 = vsel %vm1335, %v1326, 0.0
    %v1360 = vsel %vm1335, %v1327, 0.0
    %v1361 = vsel %vm1335, %v1328, 0.0
    %v1362 = vsel %vm1335, %v1329, 0.0
    %v1363 = vsel %vm1335, %v1330, 0.0
    %v1364 = vsel %vm1335, %v1331, 0.0
    %v1365 = vsel %vm1335, %v1332, 0.0
    %v1366 = vsel %vm1335, %v1333, 0.0
    %v1367 = vsel %vm1335, %v1334, 0.0
    %v1368 = vpack.c.bf16 %v1337, %v1336
    %v1369 = vpack.c.bf16 %v1339, %v1338
    %v1370 = vpack.c.bf16 %v1341, %v1340
    %v1371 = vpack.c.bf16 %v1343, %v1342
    %v1372 = vpack.c.bf16 %v1345, %v1344
    %v1373 = vpack.c.bf16 %v1347, %v1346
    %v1374 = vpack.c.bf16 %v1349, %v1348
    %v1375 = vpack.c.bf16 %v1351, %v1350
    %v1376 = vpack.c.bf16 %v1353, %v1352
    %v1377 = vpack.c.bf16 %v1355, %v1354
    %v1378 = vpack.c.bf16 %v1357, %v1356
    %v1379 = vpack.c.bf16 %v1359, %v1358
    %v1380 = vpack.c.bf16 %v1361, %v1360
    %v1381 = vpack.c.bf16 %v1363, %v1362
    %v1382 = vpack.c.bf16 %v1365, %v1364
    %v1383 = vpack.c.bf16 %v1367, %v1366
    %v1384 = vld [vmem:[%s1] sm:$0xf]
    %1385 = vmatprep.subr.bf16.mxu0 0
    %1386 = vmatpush1.bf16.xpose.msra.mxu0 %v1368
    %1387 = vmatprep.subr.bf16.mxu0 0
    %1388 = vmatpush1.bf16.xpose.msra.mxu0 %v1369
    %1389 = vmatprep.subr.bf16.mxu0 0
    %1390 = vmatpush1.bf16.xpose.msra.mxu0 %v1370
    %1391 = vmatprep.subr.bf16.mxu0 0
    %1392 = vmatpush1.bf16.xpose.msra.mxu0 %v1371
    %1393 = vmatprep.subr.bf16.mxu0 0
    %1394 = vmatpush1.bf16.xpose.msra.mxu0 %v1372
    %1395 = vmatprep.subr.bf16.mxu0 0
    %1396 = vmatpush1.bf16.xpose.msra.mxu0 %v1373
    %1397 = vmatprep.subr.bf16.mxu0 0
    %1398 = vmatpush1.bf16.xpose.msra.mxu0 %v1374
    %1399 = vmatprep.subr.bf16.mxu0 0
    %1400 = vmatpush1.bf16.xpose.msra.mxu0 %v1375
    %1401 = vmatprep.subr.bf16.mxu0 0
    %1402 = vmatpush1.bf16.xpose.msra.mxu0 %v1376
    %1403 = vmatprep.subr.bf16.mxu0 0
    %1404 = vmatpush1.bf16.xpose.msra.mxu0 %v1377
    %1405 = vmatprep.subr.bf16.mxu0 0
    %1406 = vmatpush1.bf16.xpose.msra.mxu0 %v1378
    %1407 = vmatprep.subr.bf16.mxu0 0
    %1408 = vmatpush1.bf16.xpose.msra.mxu0 %v1379
    %1409 = vmatprep.subr.bf16.mxu0 0
    %1410 = vmatpush1.bf16.xpose.msra.mxu0 %v1380
    %1411 = vmatprep.subr.bf16.mxu0 0
    %1412 = vmatpush1.bf16.xpose.msra.mxu0 %v1381
    %1413 = vmatprep.subr.bf16.mxu0 0
    %1414 = vmatpush1.bf16.xpose.msra.mxu0 %v1382
    %1415 = vmatprep.subr.bf16.mxu0 0
    %1416 = vmatpush1.bf16.xpose.msra.mxu0 %v1383
    %1417 = vmatprep.mubr.bf16.mxu0 0
    %1418 = vmatmul.mubr.bf16.gmra.mrb[0].mxu0 %v1384
    %v1419 = vpop.f32.mrb[0].mxu0
    %v1420 = vadd.f32 0.0, %v1419
    %v1421 = vpop.f32.mrb[0].mxu0
    %v1422 = vadd.f32 0.0, %v1421
    %v1423 = vpop.f32.mrb[0].mxu0
    %v1424 = vpop.f32.mrb[0].mxu0
    %1425 = vdwg.mxu0
    %1426 = vst [vmem:[#allocation2] sm:$0xff] %v1420
    %1427 = vst [vmem:[#allocation2 + $0x8] sm:$0xff] %v1422
    %s1428 = scalar_lea.vmem %s0, 432
    %v1429 = vld [vmem:[%s1428] sm:$0xff]
    %v1430 = vld [vmem:[%s1428 + $0x8] sm:$0xff]
    %v1431 = vld [vmem:[%s1428 + $0x10] sm:$0x3]
    %v1432 = vld [vmem:[%s1428 + $0x18] sm:$0xff]
    %v1433 = vld [vmem:[%s1428 + $0x20] sm:$0xff]
    %v1434 = vld [vmem:[%s1428 + $0x28] sm:$0x3]
    %v1435 = vld [vmem:[%s1428 + $0x30] sm:$0xff]
    %v1436 = vld [vmem:[%s1428 + $0x38] sm:$0xff]
    %v1437 = vld [vmem:[%s1428 + $0x40] sm:$0x3]
    %v1438 = vld [vmem:[%s1428 + $0x48] sm:$0xff]
    %v1439 = vld [vmem:[%s1428 + $0x50] sm:$0xff]
    %v1440 = vld [vmem:[%s1428 + $0x58] sm:$0x3]
    %v1441 = vld [vmem:[%s1428 + $0x60] sm:$0xff]
    %v1442 = vld [vmem:[%s1428 + $0x68] sm:$0xff]
    %v1443 = vld [vmem:[%s1428 + $0x70] sm:$0x3]
    %v1444 = vld [vmem:[%s1428 + $0x78] sm:$0xff]
    %v1445 = vld [vmem:[%s1428 + $0x80] sm:$0xff]
    %v1446 = vld [vmem:[%s1428 + $0x88] sm:$0x3]
    %v1447 = vld [vmem:[%s1428 + $0x90] sm:$0xff]
    %v1448 = vld [vmem:[%s1428 + $0x98] sm:$0xff]
    %v1449 = vld [vmem:[%s1428 + $0xa0] sm:$0x3]
    %v1450 = vld [vmem:[%s1428 + $0xa8] sm:$0xff]
    %v1451 = vld [vmem:[%s1428 + $0xb0] sm:$0xff]
    %v1452 = vld [vmem:[%s1428 + $0xb8] sm:$0x3]
    %v1453 = vld [vmem:[%s1428 + $0xc0] sm:$0xff]
    %v1454 = vld [vmem:[%s1428 + $0xc8] sm:$0xff]
    %v1455 = vld [vmem:[%s1428 + $0xd0] sm:$0x3]
    %v1456 = vld [vmem:[%s1428 + $0xd8] sm:$0xff]
    %v1457 = vld [vmem:[%s1428 + $0xe0] sm:$0xff]
    %v1458 = vld [vmem:[%s1428 + $0xe8] sm:$0x3]
    %v1459 = vld [vmem:[%s1428 + $0xf0] sm:$0xff]
    %v1460 = vld [vmem:[%s1428 + $0xf8] sm:$0xff]
    %v1461 = vld [vmem:[%s1428 + $0x100] sm:$0x3]
    %v1462 = vld [vmem:[%s1428 + $0x108] sm:$0xff]
    %v1463 = vld [vmem:[%s1428 + $0x110] sm:$0xff]
    %v1464 = vld [vmem:[%s1428 + $0x118] sm:$0x3]
    %v1465 = vld [vmem:[%s1428 + $0x120] sm:$0xff]
    %v1466 = vld [vmem:[%s1428 + $0x128] sm:$0xff]
    %v1467 = vld [vmem:[%s1428 + $0x130] sm:$0x3]
    %v1468 = vld [vmem:[%s1428 + $0x138] sm:$0xff]
    %v1469 = vld [vmem:[%s1428 + $0x140] sm:$0xff]
    %v1470 = vld [vmem:[%s1428 + $0x148] sm:$0x3]
    %v1471 = vld [vmem:[%s1428 + $0x150] sm:$0xff]
    %v1472 = vld [vmem:[%s1428 + $0x158] sm:$0xff]
    %v1473 = vld [vmem:[%s1428 + $0x160] sm:$0x3]
    %v1474 = vld [vmem:[%s1428 + $0x168] sm:$0xff]
    %v1475 = vld [vmem:[%s1428 + $0x170] sm:$0xff]
    %v1476 = vld [vmem:[%s1428 + $0x178] sm:$0x3]
    %v1477 = vld [vmem:[%s1428 + $0x180] sm:$0xff]
    %v1478 = vld [vmem:[%s1428 + $0x188] sm:$0xff]
    %v1479 = vld [vmem:[%s1428 + $0x190] sm:$0x3]
    %v1480 = vld [vmem:[%s1428 + $0x198] sm:$0xff]
    %v1481 = vld [vmem:[%s1428 + $0x1a0] sm:$0xff]
    %v1482 = vld [vmem:[%s1428 + $0x1a8] sm:$0x3]
    %v1531 = vrot.slane %v1429, 1
    %v1532 = vrot.slane %v1430, 1
    %v1533 = vsel %vm115, %v1531, %v1532
    %v1534 = vrot.slane %v1431, 1
    %v1535 = vsel %vm115, %v1532, %v1534
    %v1536 = vrot.slane %v1432, 1
    %v1537 = vrot.slane %v1433, 1
    %v1538 = vsel %vm115, %v1536, %v1537
    %v1539 = vrot.slane %v1434, 1
    %v1540 = vsel %vm115, %v1537, %v1539
    %v1541 = vrot.slane %v1435, 1
    %v1542 = vrot.slane %v1436, 1
    %v1543 = vsel %vm115, %v1541, %v1542
    %v1544 = vrot.slane %v1437, 1
    %v1545 = vsel %vm115, %v1542, %v1544
    %v1546 = vrot.slane %v1438, 1
    %v1547 = vrot.slane %v1439, 1
    %v1548 = vsel %vm115, %v1546, %v1547
    %v1549 = vrot.slane %v1440, 1
    %v1550 = vsel %vm115, %v1547, %v1549
    %v1551 = vrot.slane %v1441, 1
    %v1552 = vrot.slane %v1442, 1
    %v1553 = vsel %vm115, %v1551, %v1552
    %v1554 = vrot.slane %v1443, 1
    %v1555 = vsel %vm115, %v1552, %v1554
    %v1556 = vrot.slane %v1444, 1
    %v1557 = vrot.slane %v1445, 1
    %v1558 = vsel %vm115, %v1556, %v1557
    %v1559 = vrot.slane %v1446, 1
    %v1560 = vsel %vm115, %v1557, %v1559
    %v1561 = vrot.slane %v1447, 1
    %v1562 = vrot.slane %v1448, 1
    %v1563 = vsel %vm115, %v1561, %v1562
    %v1564 = vrot.slane %v1449, 1
    %v1565 = vsel %vm115, %v1562, %v1564
    %v1566 = vrot.slane %v1450, 1
    %v1567 = vrot.slane %v1451, 1
    %v1568 = vsel %vm115, %v1566, %v1567
    %v1569 = vrot.slane %v1452, 1
    %v1570 = vsel %vm115, %v1567, %v1569
    %v1571 = vrot.slane %v1453, 1
    %v1572 = vrot.slane %v1454, 1
    %v1573 = vsel %vm115, %v1571, %v1572
    %v1574 = vrot.slane %v1455, 1
    %v1575 = vsel %vm115, %v1572, %v1574
    %v1576 = vrot.slane %v1456, 1
    %v1577 = vrot.slane %v1457, 1
    %v1578 = vsel %vm115, %v1576, %v1577
    %v1579 = vrot.slane %v1458, 1
    %v1580 = vsel %vm115, %v1577, %v1579
    %v1581 = vrot.slane %v1459, 1
    %v1582 = vrot.slane %v1460, 1
    %v1583 = vsel %vm115, %v1581, %v1582
    %v1584 = vrot.slane %v1461, 1
    %v1585 = vsel %vm115, %v1582, %v1584
    %v1586 = vrot.slane %v1462, 1
    %v1587 = vrot.slane %v1463, 1
    %v1588 = vsel %vm115, %v1586, %v1587
    %v1589 = vrot.slane %v1464, 1
    %v1590 = vsel %vm115, %v1587, %v1589
    %v1591 = vrot.slane %v1465, 1
    %v1592 = vrot.slane %v1466, 1
    %v1593 = vsel %vm115, %v1591, %v1592
    %v1594 = vrot.slane %v1467, 1
    %v1595 = vsel %vm115, %v1592, %v1594
    %v1596 = vrot.slane %v1468, 1
    %v1597 = vrot.slane %v1469, 1
    %v1598 = vsel %vm115, %v1596, %v1597
    %v1599 = vrot.slane %v1470, 1
    %v1600 = vsel %vm115, %v1597, %v1599
    %v1601 = vrot.slane %v1471, 1
    %v1602 = vrot.slane %v1472, 1
    %v1603 = vsel %vm115, %v1601, %v1602
    %v1604 = vrot.slane %v1473, 1
    %v1605 = vsel %vm115, %v1602, %v1604
    %v1606 = vrot.slane %v1474, 1
    %v1607 = vrot.slane %v1475, 1
    %v1608 = vsel %vm115, %v1606, %v1607
    %v1609 = vrot.slane %v1476, 1
    %v1610 = vsel %vm115, %v1607, %v1609
    %1611 = vrot.lane.b32.xlu0 %v1533, 4
    %v1612 = vpop.permute.xlu0 %1611
    %1613 = vrot.lane.b32.xlu0 %v1535, 4
    %v1614 = vpop.permute.xlu0 %1613
    %1615 = vrot.lane.b32.xlu0 %v1538, 4
    %v1616 = vpop.permute.xlu0 %1615
    %1617 = vrot.lane.b32.xlu0 %v1540, 4
    %v1618 = vpop.permute.xlu0 %1617
    %1619 = vrot.lane.b32.xlu0 %v1543, 4
    %v1620 = vpop.permute.xlu0 %1619
    %1621 = vrot.lane.b32.xlu0 %v1545, 4
    %v1622 = vpop.permute.xlu0 %1621
    %1623 = vrot.lane.b32.xlu0 %v1548, 4
    %v1624 = vpop.permute.xlu0 %1623
    %1625 = vrot.lane.b32.xlu0 %v1550, 4
    %v1626 = vpop.permute.xlu0 %1625
    %1627 = vrot.lane.b32.xlu0 %v1553, 4
    %v1628 = vpop.permute.xlu0 %1627
    %1629 = vrot.lane.b32.xlu0 %v1555, 4
    %v1630 = vpop.permute.xlu0 %1629
    %1631 = vrot.lane.b32.xlu0 %v1558, 4
    %v1632 = vpop.permute.xlu0 %1631
    %1633 = vrot.lane.b32.xlu0 %v1560, 4
    %v1634 = vpop.permute.xlu0 %1633
    %1635 = vrot.lane.b32.xlu0 %v1563, 4
    %v1636 = vpop.permute.xlu0 %1635
    %1637 = vrot.lane.b32.xlu0 %v1565, 4
    %v1638 = vpop.permute.xlu0 %1637
    %1639 = vrot.lane.b32.xlu0 %v1568, 4
    %v1640 = vpop.permute.xlu0 %1639
    %1641 = vrot.lane.b32.xlu0 %v1570, 4
    %v1642 = vpop.permute.xlu0 %1641
    %1643 = vrot.lane.b32.xlu0 %v1573, 4
    %v1644 = vpop.permute.xlu0 %1643
    %1645 = vrot.lane.b32.xlu0 %v1575, 4
    %v1646 = vpop.permute.xlu0 %1645
    %1647 = vrot.lane.b32.xlu0 %v1578, 4
    %v1648 = vpop.permute.xlu0 %1647
    %1649 = vrot.lane.b32.xlu0 %v1580, 4
    %v1650 = vpop.permute.xlu0 %1649
    %1651 = vrot.lane.b32.xlu0 %v1583, 4
    %v1652 = vpop.permute.xlu0 %1651
    %1653 = vrot.lane.b32.xlu0 %v1585, 4
    %v1654 = vpop.permute.xlu0 %1653
    %1655 = vrot.lane.b32.xlu0 %v1588, 4
    %v1656 = vpop.permute.xlu0 %1655
    %1657 = vrot.lane.b32.xlu0 %v1590, 4
    %v1658 = vpop.permute.xlu0 %1657
    %1659 = vrot.lane.b32.xlu0 %v1593, 4
    %v1660 = vpop.permute.xlu0 %1659
    %1661 = vrot.lane.b32.xlu0 %v1595, 4
    %v1662 = vpop.permute.xlu0 %1661
    %1663 = vrot.lane.b32.xlu0 %v1598, 4
    %v1664 = vpop.permute.xlu0 %1663
    %1665 = vrot.lane.b32.xlu0 %v1600, 4
    %v1666 = vpop.permute.xlu0 %1665
    %1667 = vrot.lane.b32.xlu0 %v1603, 4
    %v1668 = vpop.permute.xlu0 %1667
    %1669 = vrot.lane.b32.xlu0 %v1605, 4
    %v1670 = vpop.permute.xlu0 %1669
    %1671 = vrot.lane.b32.xlu0 %v1608, 4
    %v1672 = vpop.permute.xlu0 %1671
    %1673 = vrot.lane.b32.xlu0 %v1610, 4
    %v1674 = vpop.permute.xlu0 %1673
    %v1707 = vrot.slane %v1429, 2
    %v1708 = vrot.slane %v1430, 2
    %v1709 = vsel %vm292, %v1707, %v1708
    %v1710 = vrot.slane %v1431, 2
    %v1711 = vsel %vm292, %v1708, %v1710
    %v1712 = vrot.slane %v1432, 2
    %v1713 = vrot.slane %v1433, 2
    %v1714 = vsel %vm292, %v1712, %v1713
    %v1715 = vrot.slane %v1434, 2
    %v1716 = vsel %vm292, %v1713, %v1715
    %v1717 = vrot.slane %v1435, 2
    %v1718 = vrot.slane %v1436, 2
    %v1719 = vsel %vm292, %v1717, %v1718
    %v1720 = vrot.slane %v1437, 2
    %v1721 = vsel %vm292, %v1718, %v1720
    %v1722 = vrot.slane %v1438, 2
    %v1723 = vrot.slane %v1439, 2
    %v1724 = vsel %vm292, %v1722, %v1723
    %v1725 = vrot.slane %v1440, 2
    %v1726 = vsel %vm292, %v1723, %v1725
    %v1727 = vrot.slane %v1441, 2
    %v1728 = vrot.slane %v1442, 2
    %v1729 = vsel %vm292, %v1727, %v1728
    %v1730 = vrot.slane %v1443, 2
    %v1731 = vsel %vm292, %v1728, %v1730
    %v1732 = vrot.slane %v1444, 2
    %v1733 = vrot.slane %v1445, 2
    %v1734 = vsel %vm292, %v1732, %v1733
    %v1735 = vrot.slane %v1446, 2
    %v1736 = vsel %vm292, %v1733, %v1735
    %v1737 = vrot.slane %v1447, 2
    %v1738 = vrot.slane %v1448, 2
    %v1739 = vsel %vm292, %v1737, %v1738
    %v1740 = vrot.slane %v1449, 2
    %v1741 = vsel %vm292, %v1738, %v1740
    %v1742 = vrot.slane %v1450, 2
    %v1743 = vrot.slane %v1451, 2
    %v1744 = vsel %vm292, %v1742, %v1743
    %v1745 = vrot.slane %v1452, 2
    %v1746 = vsel %vm292, %v1743, %v1745
    %v1747 = vrot.slane %v1453, 2
    %v1748 = vrot.slane %v1454, 2
    %v1749 = vsel %vm292, %v1747, %v1748
    %v1750 = vrot.slane %v1455, 2
    %v1751 = vsel %vm292, %v1748, %v1750
    %v1752 = vrot.slane %v1456, 2
    %v1753 = vrot.slane %v1457, 2
    %v1754 = vsel %vm292, %v1752, %v1753
    %v1755 = vrot.slane %v1458, 2
    %v1756 = vsel %vm292, %v1753, %v1755
    %v1757 = vrot.slane %v1459, 2
    %v1758 = vrot.slane %v1460, 2
    %v1759 = vsel %vm292, %v1757, %v1758
    %v1760 = vrot.slane %v1461, 2
    %v1761 = vsel %vm292, %v1758, %v1760
    %v1762 = vrot.slane %v1462, 2
    %v1763 = vrot.slane %v1463, 2
    %v1764 = vsel %vm292, %v1762, %v1763
    %v1765 = vrot.slane %v1464, 2
    %v1766 = vsel %vm292, %v1763, %v1765
    %v1767 = vrot.slane %v1465, 2
    %v1768 = vrot.slane %v1466, 2
    %v1769 = vsel %vm292, %v1767, %v1768
    %v1770 = vrot.slane %v1467, 2
    %v1771 = vsel %vm292, %v1768, %v1770
    %v1772 = vrot.slane %v1468, 2
    %v1773 = vrot.slane %v1469, 2
    %v1774 = vsel %vm292, %v1772, %v1773
    %v1775 = vrot.slane %v1470, 2
    %v1776 = vsel %vm292, %v1773, %v1775
    %v1777 = vrot.slane %v1471, 2
    %v1778 = vrot.slane %v1472, 2
    %v1779 = vsel %vm292, %v1777, %v1778
    %v1780 = vrot.slane %v1473, 2
    %v1781 = vsel %vm292, %v1778, %v1780
    %v1782 = vrot.slane %v1474, 2
    %v1783 = vrot.slane %v1475, 2
    %v1784 = vsel %vm292, %v1782, %v1783
    %v1785 = vrot.slane %v1476, 2
    %v1786 = vsel %vm292, %v1783, %v1785
    %1787 = vrot.lane.b32.xlu0 %v1709, 8
    %v1788 = vpop.permute.xlu0 %1787
    %1789 = vrot.lane.b32.xlu0 %v1711, 8
    %v1790 = vpop.permute.xlu0 %1789
    %1791 = vrot.lane.b32.xlu0 %v1714, 8
    %v1792 = vpop.permute.xlu0 %1791
    %1793 = vrot.lane.b32.xlu0 %v1716, 8
    %v1794 = vpop.permute.xlu0 %1793
    %1795 = vrot.lane.b32.xlu0 %v1719, 8
    %v1796 = vpop.permute.xlu0 %1795
    %1797 = vrot.lane.b32.xlu0 %v1721, 8
    %v1798 = vpop.permute.xlu0 %1797
    %1799 = vrot.lane.b32.xlu0 %v1724, 8
    %v1800 = vpop.permute.xlu0 %1799
    %1801 = vrot.lane.b32.xlu0 %v1726, 8
    %v1802 = vpop.permute.xlu0 %1801
    %1803 = vrot.lane.b32.xlu0 %v1729, 8
    %v1804 = vpop.permute.xlu0 %1803
    %1805 = vrot.lane.b32.xlu0 %v1731, 8
    %v1806 = vpop.permute.xlu0 %1805
    %1807 = vrot.lane.b32.xlu0 %v1734, 8
    %v1808 = vpop.permute.xlu0 %1807
    %1809 = vrot.lane.b32.xlu0 %v1736, 8
    %v1810 = vpop.permute.xlu0 %1809
    %1811 = vrot.lane.b32.xlu0 %v1739, 8
    %v1812 = vpop.permute.xlu0 %1811
    %1813 = vrot.lane.b32.xlu0 %v1741, 8
    %v1814 = vpop.permute.xlu0 %1813
    %1815 = vrot.lane.b32.xlu0 %v1744, 8
    %v1816 = vpop.permute.xlu0 %1815
    %1817 = vrot.lane.b32.xlu0 %v1746, 8
    %v1818 = vpop.permute.xlu0 %1817
    %1819 = vrot.lane.b32.xlu0 %v1749, 8
    %v1820 = vpop.permute.xlu0 %1819
    %1821 = vrot.lane.b32.xlu0 %v1751, 8
    %v1822 = vpop.permute.xlu0 %1821
    %1823 = vrot.lane.b32.xlu0 %v1754, 8
    %v1824 = vpop.permute.xlu0 %1823
    %1825 = vrot.lane.b32.xlu0 %v1756, 8
    %v1826 = vpop.permute.xlu0 %1825
    %1827 = vrot.lane.b32.xlu0 %v1759, 8
    %v1828 = vpop.permute.xlu0 %1827
    %1829 = vrot.lane.b32.xlu0 %v1761, 8
    %v1830 = vpop.permute.xlu0 %1829
    %1831 = vrot.lane.b32.xlu0 %v1764, 8
    %v1832 = vpop.permute.xlu0 %1831
    %1833 = vrot.lane.b32.xlu0 %v1766, 8
    %v1834 = vpop.permute.xlu0 %1833
    %1835 = vrot.lane.b32.xlu0 %v1769, 8
    %v1836 = vpop.permute.xlu0 %1835
    %1837 = vrot.lane.b32.xlu0 %v1771, 8
    %v1838 = vpop.permute.xlu0 %1837
    %1839 = vrot.lane.b32.xlu0 %v1774, 8
    %v1840 = vpop.permute.xlu0 %1839
    %1841 = vrot.lane.b32.xlu0 %v1776, 8
    %v1842 = vpop.permute.xlu0 %1841
    %1843 = vrot.lane.b32.xlu0 %v1779, 8
    %v1844 = vpop.permute.xlu0 %1843
    %1845 = vrot.lane.b32.xlu0 %v1781, 8
    %v1846 = vpop.permute.xlu0 %1845
    %1847 = vrot.lane.b32.xlu0 %v1784, 8
    %v1848 = vpop.permute.xlu0 %1847
    %1849 = vrot.lane.b32.xlu0 %v1786, 8
    %v1850 = vpop.permute.xlu0 %1849
    %1885 = vrot.lane.b32.xlu0 %v1432, 12
    %v1886 = vpop.permute.xlu0 %1885
    %1887 = vrot.lane.b32.xlu0 %v1433, 12
    %v1888 = vpop.permute.xlu0 %1887
    %1889 = vrot.lane.b32.xlu0 %v1435, 12
    %v1890 = vpop.permute.xlu0 %1889
    %1891 = vrot.lane.b32.xlu0 %v1436, 12
    %v1892 = vpop.permute.xlu0 %1891
    %1893 = vrot.lane.b32.xlu0 %v1438, 12
    %v1894 = vpop.permute.xlu0 %1893
    %1895 = vrot.lane.b32.xlu0 %v1439, 12
    %v1896 = vpop.permute.xlu0 %1895
    %1897 = vrot.lane.b32.xlu0 %v1441, 12
    %v1898 = vpop.permute.xlu0 %1897
    %1899 = vrot.lane.b32.xlu0 %v1442, 12
    %v1900 = vpop.permute.xlu0 %1899
    %1901 = vrot.lane.b32.xlu0 %v1444, 12
    %v1902 = vpop.permute.xlu0 %1901
    %1903 = vrot.lane.b32.xlu0 %v1445, 12
    %v1904 = vpop.permute.xlu0 %1903
    %1905 = vrot.lane.b32.xlu0 %v1447, 12
    %v1906 = vpop.permute.xlu0 %1905
    %1907 = vrot.lane.b32.xlu0 %v1448, 12
    %v1908 = vpop.permute.xlu0 %1907
    %1909 = vrot.lane.b32.xlu0 %v1450, 12
    %v1910 = vpop.permute.xlu0 %1909
    %1911 = vrot.lane.b32.xlu0 %v1451, 12
    %v1912 = vpop.permute.xlu0 %1911
    %1913 = vrot.lane.b32.xlu0 %v1453, 12
    %v1914 = vpop.permute.xlu0 %1913
    %1915 = vrot.lane.b32.xlu0 %v1454, 12
    %v1916 = vpop.permute.xlu0 %1915
    %1917 = vrot.lane.b32.xlu0 %v1456, 12
    %v1918 = vpop.permute.xlu0 %1917
    %1919 = vrot.lane.b32.xlu0 %v1457, 12
    %v1920 = vpop.permute.xlu0 %1919
    %1921 = vrot.lane.b32.xlu0 %v1459, 12
    %v1922 = vpop.permute.xlu0 %1921
    %1923 = vrot.lane.b32.xlu0 %v1460, 12
    %v1924 = vpop.permute.xlu0 %1923
    %1925 = vrot.lane.b32.xlu0 %v1462, 12
    %v1926 = vpop.permute.xlu0 %1925
    %1927 = vrot.lane.b32.xlu0 %v1463, 12
    %v1928 = vpop.permute.xlu0 %1927
    %1929 = vrot.lane.b32.xlu0 %v1465, 12
    %v1930 = vpop.permute.xlu0 %1929
    %1931 = vrot.lane.b32.xlu0 %v1466, 12
    %v1932 = vpop.permute.xlu0 %1931
    %1933 = vrot.lane.b32.xlu0 %v1468, 12
    %v1934 = vpop.permute.xlu0 %1933
    %1935 = vrot.lane.b32.xlu0 %v1469, 12
    %v1936 = vpop.permute.xlu0 %1935
    %1937 = vrot.lane.b32.xlu0 %v1471, 12
    %v1938 = vpop.permute.xlu0 %1937
    %1939 = vrot.lane.b32.xlu0 %v1472, 12
    %v1940 = vpop.permute.xlu0 %1939
    %1941 = vrot.lane.b32.xlu0 %v1474, 12
    %v1942 = vpop.permute.xlu0 %1941
    %1943 = vrot.lane.b32.xlu0 %v1475, 12
    %v1944 = vpop.permute.xlu0 %1943
    %1945 = vrot.lane.b32.xlu0 %v1477, 12
    %v1946 = vpop.permute.xlu0 %1945
    %1947 = vrot.lane.b32.xlu0 %v1478, 12
    %v1948 = vpop.permute.xlu0 %1947
    %v1982 = vrot.slane %v1477, 1
    %v1983 = vrot.slane %v1478, 1
    %v1984 = vsel %vm115, %v1982, %v1983
    %v1985 = vrot.slane %v1479, 1
    %v1986 = vsel %vm115, %v1983, %v1985
    %1987 = vrot.lane.b32.xlu0 %v1538, 16
    %v1988 = vpop.permute.xlu0 %1987
    %1989 = vrot.lane.b32.xlu0 %v1540, 16
    %v1990 = vpop.permute.xlu0 %1989
    %1991 = vrot.lane.b32.xlu0 %v1543, 16
    %v1992 = vpop.permute.xlu0 %1991
    %1993 = vrot.lane.b32.xlu0 %v1545, 16
    %v1994 = vpop.permute.xlu0 %1993
    %1995 = vrot.lane.b32.xlu0 %v1548, 16
    %v1996 = vpop.permute.xlu0 %1995
    %1997 = vrot.lane.b32.xlu0 %v1550, 16
    %v1998 = vpop.permute.xlu0 %1997
    %1999 = vrot.lane.b32.xlu0 %v1553, 16
    %v2000 = vpop.permute.xlu0 %1999
    %2001 = vrot.lane.b32.xlu0 %v1555, 16
    %v2002 = vpop.permute.xlu0 %2001
    %2003 = vrot.lane.b32.xlu0 %v1558, 16
    %v2004 = vpop.permute.xlu0 %2003
    %2005 = vrot.lane.b32.xlu0 %v1560, 16
    %v2006 = vpop.permute.xlu0 %2005
    %2007 = vrot.lane.b32.xlu0 %v1563, 16
    %v2008 = vpop.permute.xlu0 %2007
    %2009 = vrot.lane.b32.xlu0 %v1565, 16
    %v2010 = vpop.permute.xlu0 %2009
    %2011 = vrot.lane.b32.xlu0 %v1568, 16
    %v2012 = vpop.permute.xlu0 %2011
    %2013 = vrot.lane.b32.xlu0 %v1570, 16
    %v2014 = vpop.permute.xlu0 %2013
    %2015 = vrot.lane.b32.xlu0 %v1573, 16
    %v2016 = vpop.permute.xlu0 %2015
    %2017 = vrot.lane.b32.xlu0 %v1575, 16
    %v2018 = vpop.permute.xlu0 %2017
    %2019 = vrot.lane.b32.xlu0 %v1578, 16
    %v2020 = vpop.permute.xlu0 %2019
    %2021 = vrot.lane.b32.xlu0 %v1580, 16
    %v2022 = vpop.permute.xlu0 %2021
    %2023 = vrot.lane.b32.xlu0 %v1583, 16
    %v2024 = vpop.permute.xlu0 %2023
    %2025 = vrot.lane.b32.xlu0 %v1585, 16
    %v2026 = vpop.permute.xlu0 %2025
    %2027 = vrot.lane.b32.xlu0 %v1588, 16
    %v2028 = vpop.permute.xlu0 %2027
    %2029 = vrot.lane.b32.xlu0 %v1590, 16
    %v2030 = vpop.permute.xlu0 %2029
    %2031 = vrot.lane.b32.xlu0 %v1593, 16
    %v2032 = vpop.permute.xlu0 %2031
    %2033 = vrot.lane.b32.xlu0 %v1595, 16
    %v2034 = vpop.permute.xlu0 %2033
    %2035 = vrot.lane.b32.xlu0 %v1598, 16
    %v2036 = vpop.permute.xlu0 %2035
    %2037 = vrot.lane.b32.xlu0 %v1600, 16
    %v2038 = vpop.permute.xlu0 %2037
    %2039 = vrot.lane.b32.xlu0 %v1603, 16
    %v2040 = vpop.permute.xlu0 %2039
    %2041 = vrot.lane.b32.xlu0 %v1605, 16
    %v2042 = vpop.permute.xlu0 %2041
    %2043 = vrot.lane.b32.xlu0 %v1608, 16
    %v2044 = vpop.permute.xlu0 %2043
    %2045 = vrot.lane.b32.xlu0 %v1610, 16
    %v2046 = vpop.permute.xlu0 %2045
    %2047 = vrot.lane.b32.xlu0 %v1984, 16
    %v2048 = vpop.permute.xlu0 %2047
    %2049 = vrot.lane.b32.xlu0 %v1986, 16
    %v2050 = vpop.permute.xlu0 %2049
    %v2083 = vrot.slane %v1477, 2
    %v2084 = vrot.slane %v1478, 2
    %v2085 = vsel %vm292, %v2083, %v2084
    %v2086 = vrot.slane %v1479, 2
    %v2087 = vsel %vm292, %v2084, %v2086
    %2088 = vrot.lane.b32.xlu0 %v1714, 20
    %v2089 = vpop.permute.xlu0 %2088
    %2090 = vrot.lane.b32.xlu0 %v1716, 20
    %v2091 = vpop.permute.xlu0 %2090
    %2092 = vrot.lane.b32.xlu0 %v1719, 20
    %v2093 = vpop.permute.xlu0 %2092
    %2094 = vrot.lane.b32.xlu0 %v1721, 20
    %v2095 = vpop.permute.xlu0 %2094
    %2096 = vrot.lane.b32.xlu0 %v1724, 20
    %v2097 = vpop.permute.xlu0 %2096
    %2098 = vrot.lane.b32.xlu0 %v1726, 20
    %v2099 = vpop.permute.xlu0 %2098
    %2100 = vrot.lane.b32.xlu0 %v1729, 20
    %v2101 = vpop.permute.xlu0 %2100
    %2102 = vrot.lane.b32.xlu0 %v1731, 20
    %v2103 = vpop.permute.xlu0 %2102
    %2104 = vrot.lane.b32.xlu0 %v1734, 20
    %v2105 = vpop.permute.xlu0 %2104
    %2106 = vrot.lane.b32.xlu0 %v1736, 20
    %v2107 = vpop.permute.xlu0 %2106
    %2108 = vrot.lane.b32.xlu0 %v1739, 20
    %v2109 = vpop.permute.xlu0 %2108
    %2110 = vrot.lane.b32.xlu0 %v1741, 20
    %v2111 = vpop.permute.xlu0 %2110
    %2112 = vrot.lane.b32.xlu0 %v1744, 20
    %v2113 = vpop.permute.xlu0 %2112
    %2114 = vrot.lane.b32.xlu0 %v1746, 20
    %v2115 = vpop.permute.xlu0 %2114
    %2116 = vrot.lane.b32.xlu0 %v1749, 20
    %v2117 = vpop.permute.xlu0 %2116
    %2118 = vrot.lane.b32.xlu0 %v1751, 20
    %v2119 = vpop.permute.xlu0 %2118
    %2120 = vrot.lane.b32.xlu0 %v1754, 20
    %v2121 = vpop.permute.xlu0 %2120
    %2122 = vrot.lane.b32.xlu0 %v1756, 20
    %v2123 = vpop.permute.xlu0 %2122
    %2124 = vrot.lane.b32.xlu0 %v1759, 20
    %v2125 = vpop.permute.xlu0 %2124
    %2126 = vrot.lane.b32.xlu0 %v1761, 20
    %v2127 = vpop.permute.xlu0 %2126
    %2128 = vrot.lane.b32.xlu0 %v1764, 20
    %v2129 = vpop.permute.xlu0 %2128
    %2130 = vrot.lane.b32.xlu0 %v1766, 20
    %v2131 = vpop.permute.xlu0 %2130
    %2132 = vrot.lane.b32.xlu0 %v1769, 20
    %v2133 = vpop.permute.xlu0 %2132
    %2134 = vrot.lane.b32.xlu0 %v1771, 20
    %v2135 = vpop.permute.xlu0 %2134
    %2136 = vrot.lane.b32.xlu0 %v1774, 20
    %v2137 = vpop.permute.xlu0 %2136
    %2138 = vrot.lane.b32.xlu0 %v1776, 20
    %v2139 = vpop.permute.xlu0 %2138
    %2140 = vrot.lane.b32.xlu0 %v1779, 20
    %v2141 = vpop.permute.xlu0 %2140
    %2142 = vrot.lane.b32.xlu0 %v1781, 20
    %v2143 = vpop.permute.xlu0 %2142
    %2144 = vrot.lane.b32.xlu0 %v1784, 20
    %v2145 = vpop.permute.xlu0 %2144
    %2146 = vrot.lane.b32.xlu0 %v1786, 20
    %v2147 = vpop.permute.xlu0 %2146
    %2148 = vrot.lane.b32.xlu0 %v2085, 20
    %v2149 = vpop.permute.xlu0 %2148
    %2150 = vrot.lane.b32.xlu0 %v2087, 20
    %v2151 = vpop.permute.xlu0 %2150
    %2186 = vrot.lane.b32.xlu0 %v1435, 24
    %v2187 = vpop.permute.xlu0 %2186
    %2188 = vrot.lane.b32.xlu0 %v1436, 24
    %v2189 = vpop.permute.xlu0 %2188
    %2190 = vrot.lane.b32.xlu0 %v1438, 24
    %v2191 = vpop.permute.xlu0 %2190
    %2192 = vrot.lane.b32.xlu0 %v1439, 24
    %v2193 = vpop.permute.xlu0 %2192
    %2194 = vrot.lane.b32.xlu0 %v1441, 24
    %v2195 = vpop.permute.xlu0 %2194
    %2196 = vrot.lane.b32.xlu0 %v1442, 24
    %v2197 = vpop.permute.xlu0 %2196
    %2198 = vrot.lane.b32.xlu0 %v1444, 24
    %v2199 = vpop.permute.xlu0 %2198
    %2200 = vrot.lane.b32.xlu0 %v1445, 24
    %v2201 = vpop.permute.xlu0 %2200
    %2202 = vrot.lane.b32.xlu0 %v1447, 24
    %v2203 = vpop.permute.xlu0 %2202
    %2204 = vrot.lane.b32.xlu0 %v1448, 24
    %v2205 = vpop.permute.xlu0 %2204
    %2206 = vrot.lane.b32.xlu0 %v1450, 24
    %v2207 = vpop.permute.xlu0 %2206
    %2208 = vrot.lane.b32.xlu0 %v1451, 24
    %v2209 = vpop.permute.xlu0 %2208
    %2210 = vrot.lane.b32.xlu0 %v1453, 24
    %v2211 = vpop.permute.xlu0 %2210
    %2212 = vrot.lane.b32.xlu0 %v1454, 24
    %v2213 = vpop.permute.xlu0 %2212
    %2214 = vrot.lane.b32.xlu0 %v1456, 24
    %v2215 = vpop.permute.xlu0 %2214
    %2216 = vrot.lane.b32.xlu0 %v1457, 24
    %v2217 = vpop.permute.xlu0 %2216
    %2218 = vrot.lane.b32.xlu0 %v1459, 24
    %v2219 = vpop.permute.xlu0 %2218
    %2220 = vrot.lane.b32.xlu0 %v1460, 24
    %v2221 = vpop.permute.xlu0 %2220
    %2222 = vrot.lane.b32.xlu0 %v1462, 24
    %v2223 = vpop.permute.xlu0 %2222
    %2224 = vrot.lane.b32.xlu0 %v1463, 24
    %v2225 = vpop.permute.xlu0 %2224
    %2226 = vrot.lane.b32.xlu0 %v1465, 24
    %v2227 = vpop.permute.xlu0 %2226
    %2228 = vrot.lane.b32.xlu0 %v1466, 24
    %v2229 = vpop.permute.xlu0 %2228
    %2230 = vrot.lane.b32.xlu0 %v1468, 24
    %v2231 = vpop.permute.xlu0 %2230
    %2232 = vrot.lane.b32.xlu0 %v1469, 24
    %v2233 = vpop.permute.xlu0 %2232
    %2234 = vrot.lane.b32.xlu0 %v1471, 24
    %v2235 = vpop.permute.xlu0 %2234
    %2236 = vrot.lane.b32.xlu0 %v1472, 24
    %v2237 = vpop.permute.xlu0 %2236
    %2238 = vrot.lane.b32.xlu0 %v1474, 24
    %v2239 = vpop.permute.xlu0 %2238
    %2240 = vrot.lane.b32.xlu0 %v1475, 24
    %v2241 = vpop.permute.xlu0 %2240
    %2242 = vrot.lane.b32.xlu0 %v1477, 24
    %v2243 = vpop.permute.xlu0 %2242
    %2244 = vrot.lane.b32.xlu0 %v1478, 24
    %v2245 = vpop.permute.xlu0 %2244
    %2246 = vrot.lane.b32.xlu0 %v1480, 24
    %v2247 = vpop.permute.xlu0 %2246
    %2248 = vrot.lane.b32.xlu0 %v1481, 24
    %v2249 = vpop.permute.xlu0 %2248
    %v2283 = vrot.slane %v1480, 1
    %v2284 = vrot.slane %v1481, 1
    %v2285 = vsel %vm115, %v2283, %v2284
    %v2286 = vrot.slane %v1482, 1
    %v2287 = vsel %vm115, %v2284, %v2286
    %2288 = vrot.lane.b32.xlu0 %v1543, 28
    %v2289 = vpop.permute.xlu0 %2288
    %2290 = vrot.lane.b32.xlu0 %v1545, 28
    %v2291 = vpop.permute.xlu0 %2290
    %2292 = vrot.lane.b32.xlu0 %v1548, 28
    %v2293 = vpop.permute.xlu0 %2292
    %2294 = vrot.lane.b32.xlu0 %v1550, 28
    %v2295 = vpop.permute.xlu0 %2294
    %2296 = vrot.lane.b32.xlu0 %v1553, 28
    %v2297 = vpop.permute.xlu0 %2296
    %2298 = vrot.lane.b32.xlu0 %v1555, 28
    %v2299 = vpop.permute.xlu0 %2298
    %2300 = vrot.lane.b32.xlu0 %v1558, 28
    %v2301 = vpop.permute.xlu0 %2300
    %2302 = vrot.lane.b32.xlu0 %v1560, 28
    %v2303 = vpop.permute.xlu0 %2302
    %2304 = vrot.lane.b32.xlu0 %v1563, 28
    %v2305 = vpop.permute.xlu0 %2304
    %2306 = vrot.lane.b32.xlu0 %v1565, 28
    %v2307 = vpop.permute.xlu0 %2306
    %2308 = vrot.lane.b32.xlu0 %v1568, 28
    %v2309 = vpop.permute.xlu0 %2308
    %2310 = vrot.lane.b32.xlu0 %v1570, 28
    %v2311 = vpop.permute.xlu0 %2310
    %2312 = vrot.lane.b32.xlu0 %v1573, 28
    %v2313 = vpop.permute.xlu0 %2312
    %2314 = vrot.lane.b32.xlu0 %v1575, 28
    %v2315 = vpop.permute.xlu0 %2314
    %2316 = vrot.lane.b32.xlu0 %v1578, 28
    %v2317 = vpop.permute.xlu0 %2316
    %2318 = vrot.lane.b32.xlu0 %v1580, 28
    %v2319 = vpop.permute.xlu0 %2318
    %2320 = vrot.lane.b32.xlu0 %v1583, 28
    %v2321 = vpop.permute.xlu0 %2320
    %2322 = vrot.lane.b32.xlu0 %v1585, 28
    %v2323 = vpop.permute.xlu0 %2322
    %2324 = vrot.lane.b32.xlu0 %v1588, 28
    %v2325 = vpop.permute.xlu0 %2324
    %2326 = vrot.lane.b32.xlu0 %v1590, 28
    %v2327 = vpop.permute.xlu0 %2326
    %2328 = vrot.lane.b32.xlu0 %v1593, 28
    %v2329 = vpop.permute.xlu0 %2328
    %2330 = vrot.lane.b32.xlu0 %v1595, 28
    %v2331 = vpop.permute.xlu0 %2330
    %2332 = vrot.lane.b32.xlu0 %v1598, 28
    %v2333 = vpop.permute.xlu0 %2332
    %2334 = vrot.lane.b32.xlu0 %v1600, 28
    %v2335 = vpop.permute.xlu0 %2334
    %2336 = vrot.lane.b32.xlu0 %v1603, 28
    %v2337 = vpop.permute.xlu0 %2336
    %2338 = vrot.lane.b32.xlu0 %v1605, 28
    %v2339 = vpop.permute.xlu0 %2338
    %2340 = vrot.lane.b32.xlu0 %v1608, 28
    %v2341 = vpop.permute.xlu0 %2340
    %2342 = vrot.lane.b32.xlu0 %v1610, 28
    %v2343 = vpop.permute.xlu0 %2342
    %2344 = vrot.lane.b32.xlu0 %v1984, 28
    %v2345 = vpop.permute.xlu0 %2344
    %2346 = vrot.lane.b32.xlu0 %v1986, 28
    %v2347 = vpop.permute.xlu0 %2346
    %2348 = vrot.lane.b32.xlu0 %v2285, 28
    %v2349 = vpop.permute.xlu0 %2348
    %2350 = vrot.lane.b32.xlu0 %v2287, 28
    %v2351 = vpop.permute.xlu0 %2350
    %v2384 = vrot.slane %v1480, 2
    %v2385 = vrot.slane %v1481, 2
    %v2386 = vsel %vm292, %v2384, %v2385
    %v2387 = vrot.slane %v1482, 2
    %v2388 = vsel %vm292, %v2385, %v2387
    %2389 = vrot.lane.b32.xlu0 %v1719, 32
    %v2390 = vpop.permute.xlu0 %2389
    %2391 = vrot.lane.b32.xlu0 %v1721, 32
    %v2392 = vpop.permute.xlu0 %2391
    %2393 = vrot.lane.b32.xlu0 %v1724, 32
    %v2394 = vpop.permute.xlu0 %2393
    %2395 = vrot.lane.b32.xlu0 %v1726, 32
    %v2396 = vpop.permute.xlu0 %2395
    %2397 = vrot.lane.b32.xlu0 %v1729, 32
    %v2398 = vpop.permute.xlu0 %2397
    %2399 = vrot.lane.b32.xlu0 %v1731, 32
    %v2400 = vpop.permute.xlu0 %2399
    %2401 = vrot.lane.b32.xlu0 %v1734, 32
    %v2402 = vpop.permute.xlu0 %2401
    %2403 = vrot.lane.b32.xlu0 %v1736, 32
    %v2404 = vpop.permute.xlu0 %2403
    %2405 = vrot.lane.b32.xlu0 %v1739, 32
    %v2406 = vpop.permute.xlu0 %2405
    %2407 = vrot.lane.b32.xlu0 %v1741, 32
    %v2408 = vpop.permute.xlu0 %2407
    %2409 = vrot.lane.b32.xlu0 %v1744, 32
    %v2410 = vpop.permute.xlu0 %2409
    %2411 = vrot.lane.b32.xlu0 %v1746, 32
    %v2412 = vpop.permute.xlu0 %2411
    %2413 = vrot.lane.b32.xlu0 %v1749, 32
    %v2414 = vpop.permute.xlu0 %2413
    %2415 = vrot.lane.b32.xlu0 %v1751, 32
    %v2416 = vpop.permute.xlu0 %2415
    %2417 = vrot.lane.b32.xlu0 %v1754, 32
    %v2418 = vpop.permute.xlu0 %2417
    %2419 = vrot.lane.b32.xlu0 %v1756, 32
    %v2420 = vpop.permute.xlu0 %2419
    %2421 = vrot.lane.b32.xlu0 %v1759, 32
    %v2422 = vpop.permute.xlu0 %2421
    %2423 = vrot.lane.b32.xlu0 %v1761, 32
    %v2424 = vpop.permute.xlu0 %2423
    %2425 = vrot.lane.b32.xlu0 %v1764, 32
    %v2426 = vpop.permute.xlu0 %2425
    %2427 = vrot.lane.b32.xlu0 %v1766, 32
    %v2428 = vpop.permute.xlu0 %2427
    %2429 = vrot.lane.b32.xlu0 %v1769, 32
    %v2430 = vpop.permute.xlu0 %2429
    %2431 = vrot.lane.b32.xlu0 %v1771, 32
    %v2432 = vpop.permute.xlu0 %2431
    %2433 = vrot.lane.b32.xlu0 %v1774, 32
    %v2434 = vpop.permute.xlu0 %2433
    %2435 = vrot.lane.b32.xlu0 %v1776, 32
    %v2436 = vpop.permute.xlu0 %2435
    %2437 = vrot.lane.b32.xlu0 %v1779, 32
    %v2438 = vpop.permute.xlu0 %2437
    %2439 = vrot.lane.b32.xlu0 %v1781, 32
    %v2440 = vpop.permute.xlu0 %2439
    %2441 = vrot.lane.b32.xlu0 %v1784, 32
    %v2442 = vpop.permute.xlu0 %2441
    %2443 = vrot.lane.b32.xlu0 %v1786, 32
    %v2444 = vpop.permute.xlu0 %2443
    %2445 = vrot.lane.b32.xlu0 %v2085, 32
    %v2446 = vpop.permute.xlu0 %2445
    %2447 = vrot.lane.b32.xlu0 %v2087, 32
    %v2448 = vpop.permute.xlu0 %2447
    %2449 = vrot.lane.b32.xlu0 %v2386, 32
    %v2450 = vpop.permute.xlu0 %2449
    %2451 = vrot.lane.b32.xlu0 %v2388, 32
    %v2452 = vpop.permute.xlu0 %2451
    %v2485 = vsel %vm1071, %v1429, %v1612
    %v2486 = vsel %vm1071, %v1430, %v1614
    %v2487 = vsel %vm1071, %v1432, %v1616
    %v2488 = vsel %vm1071, %v1433, %v1618
    %v2489 = vsel %vm1071, %v1435, %v1620
    %v2490 = vsel %vm1071, %v1436, %v1622
    %v2491 = vsel %vm1071, %v1438, %v1624
    %v2492 = vsel %vm1071, %v1439, %v1626
    %v2493 = vsel %vm1071, %v1441, %v1628
    %v2494 = vsel %vm1071, %v1442, %v1630
    %v2495 = vsel %vm1071, %v1444, %v1632
    %v2496 = vsel %vm1071, %v1445, %v1634
    %v2497 = vsel %vm1071, %v1447, %v1636
    %v2498 = vsel %vm1071, %v1448, %v1638
    %v2499 = vsel %vm1071, %v1450, %v1640
    %v2500 = vsel %vm1071, %v1451, %v1642
    %v2501 = vsel %vm1071, %v1453, %v1644
    %v2502 = vsel %vm1071, %v1454, %v1646
    %v2503 = vsel %vm1071, %v1456, %v1648
    %v2504 = vsel %vm1071, %v1457, %v1650
    %v2505 = vsel %vm1071, %v1459, %v1652
    %v2506 = vsel %vm1071, %v1460, %v1654
    %v2507 = vsel %vm1071, %v1462, %v1656
    %v2508 = vsel %vm1071, %v1463, %v1658
    %v2509 = vsel %vm1071, %v1465, %v1660
    %v2510 = vsel %vm1071, %v1466, %v1662
    %v2511 = vsel %vm1071, %v1468, %v1664
    %v2512 = vsel %vm1071, %v1469, %v1666
    %v2513 = vsel %vm1071, %v1471, %v1668
    %v2514 = vsel %vm1071, %v1472, %v1670
    %v2515 = vsel %vm1071, %v1474, %v1672
    %v2516 = vsel %vm1071, %v1475, %v1674
    %v2517 = vsel %vm1104, %v2485, %v1788
    %v2518 = vsel %vm1104, %v2486, %v1790
    %v2519 = vsel %vm1104, %v2487, %v1792
    %v2520 = vsel %vm1104, %v2488, %v1794
    %v2521 = vsel %vm1104, %v2489, %v1796
    %v2522 = vsel %vm1104, %v2490, %v1798
    %v2523 = vsel %vm1104, %v2491, %v1800
    %v2524 = vsel %vm1104, %v2492, %v1802
    %v2525 = vsel %vm1104, %v2493, %v1804
    %v2526 = vsel %vm1104, %v2494, %v1806
    %v2527 = vsel %vm1104, %v2495, %v1808
    %v2528 = vsel %vm1104, %v2496, %v1810
    %v2529 = vsel %vm1104, %v2497, %v1812
    %v2530 = vsel %vm1104, %v2498, %v1814
    %v2531 = vsel %vm1104, %v2499, %v1816
    %v2532 = vsel %vm1104, %v2500, %v1818
    %v2533 = vsel %vm1104, %v2501, %v1820
    %v2534 = vsel %vm1104, %v2502, %v1822
    %v2535 = vsel %vm1104, %v2503, %v1824
    %v2536 = vsel %vm1104, %v2504, %v1826
    %v2537 = vsel %vm1104, %v2505, %v1828
    %v2538 = vsel %vm1104, %v2506, %v1830
    %v2539 = vsel %vm1104, %v2507, %v1832
    %v2540 = vsel %vm1104, %v2508, %v1834
    %v2541 = vsel %vm1104, %v2509, %v1836
    %v2542 = vsel %vm1104, %v2510, %v1838
    %v2543 = vsel %vm1104, %v2511, %v1840
    %v2544 = vsel %vm1104, %v2512, %v1842
    %v2545 = vsel %vm1104, %v2513, %v1844
    %v2546 = vsel %vm1104, %v2514, %v1846
    %v2547 = vsel %vm1104, %v2515, %v1848
    %v2548 = vsel %vm1104, %v2516, %v1850
    %v2549 = vsel %vm1137, %v2517, %v1886
    %v2550 = vsel %vm1137, %v2518, %v1888
    %v2551 = vsel %vm1137, %v2519, %v1890
    %v2552 = vsel %vm1137, %v2520, %v1892
    %v2553 = vsel %vm1137, %v2521, %v1894
    %v2554 = vsel %vm1137, %v2522, %v1896
    %v2555 = vsel %vm1137, %v2523, %v1898
    %v2556 = vsel %vm1137, %v2524, %v1900
    %v2557 = vsel %vm1137, %v2525, %v1902
    %v2558 = vsel %vm1137, %v2526, %v1904
    %v2559 = vsel %vm1137, %v2527, %v1906
    %v2560 = vsel %vm1137, %v2528, %v1908
    %v2561 = vsel %vm1137, %v2529, %v1910
    %v2562 = vsel %vm1137, %v2530, %v1912
    %v2563 = vsel %vm1137, %v2531, %v1914
    %v2564 = vsel %vm1137, %v2532, %v1916
    %v2565 = vsel %vm1137, %v2533, %v1918
    %v2566 = vsel %vm1137, %v2534, %v1920
    %v2567 = vsel %vm1137, %v2535, %v1922
    %v2568 = vsel %vm1137, %v2536, %v1924
    %v2569 = vsel %vm1137, %v2537, %v1926
    %v2570 = vsel %vm1137, %v2538, %v1928
    %v2571 = vsel %vm1137, %v2539, %v1930
    %v2572 = vsel %vm1137, %v2540, %v1932
    %v2573 = vsel %vm1137, %v2541, %v1934
    %v2574 = vsel %vm1137, %v2542, %v1936
    %v2575 = vsel %vm1137, %v2543, %v1938
    %v2576 = vsel %vm1137, %v2544, %v1940
    %v2577 = vsel %vm1137, %v2545, %v1942
    %v2578 = vsel %vm1137, %v2546, %v1944
    %v2579 = vsel %vm1137, %v2547, %v1946
    %v2580 = vsel %vm1137, %v2548, %v1948
    %v2581 = vsel %vm1170, %v2549, %v1988
    %v2582 = vsel %vm1170, %v2550, %v1990
    %v2583 = vsel %vm1170, %v2551, %v1992
    %v2584 = vsel %vm1170, %v2552, %v1994
    %v2585 = vsel %vm1170, %v2553, %v1996
    %v2586 = vsel %vm1170, %v2554, %v1998
    %v2587 = vsel %vm1170, %v2555, %v2000
    %v2588 = vsel %vm1170, %v2556, %v2002
    %v2589 = vsel %vm1170, %v2557, %v2004
    %v2590 = vsel %vm1170, %v2558, %v2006
    %v2591 = vsel %vm1170, %v2559, %v2008
    %v2592 = vsel %vm1170, %v2560, %v2010
    %v2593 = vsel %vm1170, %v2561, %v2012
    %v2594 = vsel %vm1170, %v2562, %v2014
    %v2595 = vsel %vm1170, %v2563, %v2016
    %v2596 = vsel %vm1170, %v2564, %v2018
    %v2597 = vsel %vm1170, %v2565, %v2020
    %v2598 = vsel %vm1170, %v2566, %v2022
    %v2599 = vsel %vm1170, %v2567, %v2024
    %v2600 = vsel %vm1170, %v2568, %v2026
    %v2601 = vsel %vm1170, %v2569, %v2028
    %v2602 = vsel %vm1170, %v2570, %v2030
    %v2603 = vsel %vm1170, %v2571, %v2032
    %v2604 = vsel %vm1170, %v2572, %v2034
    %v2605 = vsel %vm1170, %v2573, %v2036
    %v2606 = vsel %vm1170, %v2574, %v2038
    %v2607 = vsel %vm1170, %v2575, %v2040
    %v2608 = vsel %vm1170, %v2576, %v2042
    %v2609 = vsel %vm1170, %v2577, %v2044
    %v2610 = vsel %vm1170, %v2578, %v2046
    %v2611 = vsel %vm1170, %v2579, %v2048
    %v2612 = vsel %vm1170, %v2580, %v2050
    %v2613 = vsel %vm1203, %v2581, %v2089
    %v2614 = vsel %vm1203, %v2582, %v2091
    %v2615 = vsel %vm1203, %v2583, %v2093
    %v2616 = vsel %vm1203, %v2584, %v2095
    %v2617 = vsel %vm1203, %v2585, %v2097
    %v2618 = vsel %vm1203, %v2586, %v2099
    %v2619 = vsel %vm1203, %v2587, %v2101
    %v2620 = vsel %vm1203, %v2588, %v2103
    %v2621 = vsel %vm1203, %v2589, %v2105
    %v2622 = vsel %vm1203, %v2590, %v2107
    %v2623 = vsel %vm1203, %v2591, %v2109
    %v2624 = vsel %vm1203, %v2592, %v2111
    %v2625 = vsel %vm1203, %v2593, %v2113
    %v2626 = vsel %vm1203, %v2594, %v2115
    %v2627 = vsel %vm1203, %v2595, %v2117
    %v2628 = vsel %vm1203, %v2596, %v2119
    %v2629 = vsel %vm1203, %v2597, %v2121
    %v2630 = vsel %vm1203, %v2598, %v2123
    %v2631 = vsel %vm1203, %v2599, %v2125
    %v2632 = vsel %vm1203, %v2600, %v2127
    %v2633 = vsel %vm1203, %v2601, %v2129
    %v2634 = vsel %vm1203, %v2602, %v2131
    %v2635 = vsel %vm1203, %v2603, %v2133
    %v2636 = vsel %vm1203, %v2604, %v2135
    %v2637 = vsel %vm1203, %v2605, %v2137
    %v2638 = vsel %vm1203, %v2606, %v2139
    %v2639 = vsel %vm1203, %v2607, %v2141
    %v2640 = vsel %vm1203, %v2608, %v2143
    %v2641 = vsel %vm1203, %v2609, %v2145
    %v2642 = vsel %vm1203, %v2610, %v2147
    %v2643 = vsel %vm1203, %v2611, %v2149
    %v2644 = vsel %vm1203, %v2612, %v2151
    %v2645 = vsel %vm1236, %v2613, %v2187
    %v2646 = vsel %vm1236, %v2614, %v2189
    %v2647 = vsel %vm1236, %v2615, %v2191
    %v2648 = vsel %vm1236, %v2616, %v2193
    %v2649 = vsel %vm1236, %v2617, %v2195
    %v2650 = vsel %vm1236, %v2618, %v2197
    %v2651 = vsel %vm1236, %v2619, %v2199
    %v2652 = vsel %vm1236, %v2620, %v2201
    %v2653 = vsel %vm1236, %v2621, %v2203
    %v2654 = vsel %vm1236, %v2622, %v2205
    %v2655 = vsel %vm1236, %v2623, %v2207
    %v2656 = vsel %vm1236, %v2624, %v2209
    %v2657 = vsel %vm1236, %v2625, %v2211
    %v2658 = vsel %vm1236, %v2626, %v2213
    %v2659 = vsel %vm1236, %v2627, %v2215
    %v2660 = vsel %vm1236, %v2628, %v2217
    %v2661 = vsel %vm1236, %v2629, %v2219
    %v2662 = vsel %vm1236, %v2630, %v2221
    %v2663 = vsel %vm1236, %v2631, %v2223
    %v2664 = vsel %vm1236, %v2632, %v2225
    %v2665 = vsel %vm1236, %v2633, %v2227
    %v2666 = vsel %vm1236, %v2634, %v2229
    %v2667 = vsel %vm1236, %v2635, %v2231
    %v2668 = vsel %vm1236, %v2636, %v2233
    %v2669 = vsel %vm1236, %v2637, %v2235
    %v2670 = vsel %vm1236, %v2638, %v2237
    %v2671 = vsel %vm1236, %v2639, %v2239
    %v2672 = vsel %vm1236, %v2640, %v2241
    %v2673 = vsel %vm1236, %v2641, %v2243
    %v2674 = vsel %vm1236, %v2642, %v2245
    %v2675 = vsel %vm1236, %v2643, %v2247
    %v2676 = vsel %vm1236, %v2644, %v2249
    %v2677 = vsel %vm1269, %v2645, %v2289
    %v2678 = vsel %vm1269, %v2646, %v2291
    %v2679 = vsel %vm1269, %v2647, %v2293
    %v2680 = vsel %vm1269, %v2648, %v2295
    %v2681 = vsel %vm1269, %v2649, %v2297
    %v2682 = vsel %vm1269, %v2650, %v2299
    %v2683 = vsel %vm1269, %v2651, %v2301
    %v2684 = vsel %vm1269, %v2652, %v2303
    %v2685 = vsel %vm1269, %v2653, %v2305
    %v2686 = vsel %vm1269, %v2654, %v2307
    %v2687 = vsel %vm1269, %v2655, %v2309
    %v2688 = vsel %vm1269, %v2656, %v2311
    %v2689 = vsel %vm1269, %v2657, %v2313
    %v2690 = vsel %vm1269, %v2658, %v2315
    %v2691 = vsel %vm1269, %v2659, %v2317
    %v2692 = vsel %vm1269, %v2660, %v2319
    %v2693 = vsel %vm1269, %v2661, %v2321
    %v2694 = vsel %vm1269, %v2662, %v2323
    %v2695 = vsel %vm1269, %v2663, %v2325
    %v2696 = vsel %vm1269, %v2664, %v2327
    %v2697 = vsel %vm1269, %v2665, %v2329
    %v2698 = vsel %vm1269, %v2666, %v2331
    %v2699 = vsel %vm1269, %v2667, %v2333
    %v2700 = vsel %vm1269, %v2668, %v2335
    %v2701 = vsel %vm1269, %v2669, %v2337
    %v2702 = vsel %vm1269, %v2670, %v2339
    %v2703 = vsel %vm1269, %v2671, %v2341
    %v2704 = vsel %vm1269, %v2672, %v2343
    %v2705 = vsel %vm1269, %v2673, %v2345
    %v2706 = vsel %vm1269, %v2674, %v2347
    %v2707 = vsel %vm1269, %v2675, %v2349
    %v2708 = vsel %vm1269, %v2676, %v2351
    %v2709 = vsel %vm1302, %v2677, %v2390
    %v2710 = vsel %vm1302, %v2678, %v2392
    %v2711 = vsel %vm1302, %v2679, %v2394
    %v2712 = vsel %vm1302, %v2680, %v2396
    %v2713 = vsel %vm1302, %v2681, %v2398
    %v2714 = vsel %vm1302, %v2682, %v2400
    %v2715 = vsel %vm1302, %v2683, %v2402
    %v2716 = vsel %vm1302, %v2684, %v2404
    %v2717 = vsel %vm1302, %v2685, %v2406
    %v2718 = vsel %vm1302, %v2686, %v2408
    %v2719 = vsel %vm1302, %v2687, %v2410
    %v2720 = vsel %vm1302, %v2688, %v2412
    %v2721 = vsel %vm1302, %v2689, %v2414
    %v2722 = vsel %vm1302, %v2690, %v2416
    %v2723 = vsel %vm1302, %v2691, %v2418
    %v2724 = vsel %vm1302, %v2692, %v2420
    %v2725 = vsel %vm1302, %v2693, %v2422
    %v2726 = vsel %vm1302, %v2694, %v2424
    %v2727 = vsel %vm1302, %v2695, %v2426
    %v2728 = vsel %vm1302, %v2696, %v2428
    %v2729 = vsel %vm1302, %v2697, %v2430
    %v2730 = vsel %vm1302, %v2698, %v2432
    %v2731 = vsel %vm1302, %v2699, %v2434
    %v2732 = vsel %vm1302, %v2700, %v2436
    %v2733 = vsel %vm1302, %v2701, %v2438
    %v2734 = vsel %vm1302, %v2702, %v2440
    %v2735 = vsel %vm1302, %v2703, %v2442
    %v2736 = vsel %vm1302, %v2704, %v2444
    %v2737 = vsel %vm1302, %v2705, %v2446
    %v2738 = vsel %vm1302, %v2706, %v2448
    %v2739 = vsel %vm1302, %v2707, %v2450
    %v2740 = vsel %vm1302, %v2708, %v2452
    %v2741 = vsel %vm1335, %v2709, 0.0
    %v2742 = vsel %vm1335, %v2710, 0.0
    %v2743 = vsel %vm1335, %v2711, 0.0
    %v2744 = vsel %vm1335, %v2712, 0.0
    %v2745 = vsel %vm1335, %v2713, 0.0
    %v2746 = vsel %vm1335, %v2714, 0.0
    %v2747 = vsel %vm1335, %v2715, 0.0
    %v2748 = vsel %vm1335, %v2716, 0.0
    %v2749 = vsel %vm1335, %v2717, 0.0
    %v2750 = vsel %vm1335, %v2718, 0.0
    %v2751 = vsel %vm1335, %v2719, 0.0
    %v2752 = vsel %vm1335, %v2720, 0.0
    %v2753 = vsel %vm1335, %v2721, 0.0
    %v2754 = vsel %vm1335, %v2722, 0.0
    %v2755 = vsel %vm1335, %v2723, 0.0
    %v2756 = vsel %vm1335, %v2724, 0.0
    %v2757 = vsel %vm1335, %v2725, 0.0
    %v2758 = vsel %vm1335, %v2726, 0.0
    %v2759 = vsel %vm1335, %v2727, 0.0
    %v2760 = vsel %vm1335, %v2728, 0.0
    %v2761 = vsel %vm1335, %v2729, 0.0
    %v2762 = vsel %vm1335, %v2730, 0.0
    %v2763 = vsel %vm1335, %v2731, 0.0
    %v2764 = vsel %vm1335, %v2732, 0.0
    %v2765 = vsel %vm1335, %v2733, 0.0
    %v2766 = vsel %vm1335, %v2734, 0.0
    %v2767 = vsel %vm1335, %v2735, 0.0
    %v2768 = vsel %vm1335, %v2736, 0.0
    %v2769 = vsel %vm1335, %v2737, 0.0
    %v2770 = vsel %vm1335, %v2738, 0.0
    %v2771 = vsel %vm1335, %v2739, 0.0
    %v2772 = vsel %vm1335, %v2740, 0.0
    %v2773 = vpack.c.bf16 %v2742, %v2741
    %v2774 = vpack.c.bf16 %v2744, %v2743
    %v2775 = vpack.c.bf16 %v2746, %v2745
    %v2776 = vpack.c.bf16 %v2748, %v2747
    %v2777 = vpack.c.bf16 %v2750, %v2749
    %v2778 = vpack.c.bf16 %v2752, %v2751
    %v2779 = vpack.c.bf16 %v2754, %v2753
    %v2780 = vpack.c.bf16 %v2756, %v2755
    %v2781 = vpack.c.bf16 %v2758, %v2757
    %v2782 = vpack.c.bf16 %v2760, %v2759
    %v2783 = vpack.c.bf16 %v2762, %v2761
    %v2784 = vpack.c.bf16 %v2764, %v2763
    %v2785 = vpack.c.bf16 %v2766, %v2765
    %v2786 = vpack.c.bf16 %v2768, %v2767
    %v2787 = vpack.c.bf16 %v2770, %v2769
    %v2788 = vpack.c.bf16 %v2772, %v2771
    %v2789 = vld [vmem:[%s1] sm:$0xf]
    %2790 = vmatprep.subr.bf16.mxu0 0
    %2791 = vmatpush1.bf16.xpose.msra.mxu0 %v2773
    %2792 = vmatprep.subr.bf16.mxu0 0
    %2793 = vmatpush1.bf16.xpose.msra.mxu0 %v2774
    %2794 = vmatprep.subr.bf16.mxu0 0
    %2795 = vmatpush1.bf16.xpose.msra.mxu0 %v2775
    %2796 = vmatprep.subr.bf16.mxu0 0
    %2797 = vmatpush1.bf16.xpose.msra.mxu0 %v2776
    %2798 = vmatprep.subr.bf16.mxu0 0
    %2799 = vmatpush1.bf16.xpose.msra.mxu0 %v2777
    %2800 = vmatprep.subr.bf16.mxu0 0
    %2801 = vmatpush1.bf16.xpose.msra.mxu0 %v2778
    %2802 = vmatprep.subr.bf16.mxu0 0
    %2803 = vmatpush1.bf16.xpose.msra.mxu0 %v2779
    %2804 = vmatprep.subr.bf16.mxu0 0
    %2805 = vmatpush1.bf16.xpose.msra.mxu0 %v2780
    %2806 = vmatprep.subr.bf16.mxu0 0
    %2807 = vmatpush1.bf16.xpose.msra.mxu0 %v2781
    %2808 = vmatprep.subr.bf16.mxu0 0
    %2809 = vmatpush1.bf16.xpose.msra.mxu0 %v2782
    %2810 = vmatprep.subr.bf16.mxu0 0
    %2811 = vmatpush1.bf16.xpose.msra.mxu0 %v2783
    %2812 = vmatprep.subr.bf16.mxu0 0
    %2813 = vmatpush1.bf16.xpose.msra.mxu0 %v2784
    %2814 = vmatprep.subr.bf16.mxu0 0
    %2815 = vmatpush1.bf16.xpose.msra.mxu0 %v2785
    %2816 = vmatprep.subr.bf16.mxu0 0
    %2817 = vmatpush1.bf16.xpose.msra.mxu0 %v2786
    %2818 = vmatprep.subr.bf16.mxu0 0
    %2819 = vmatpush1.bf16.xpose.msra.mxu0 %v2787
    %2820 = vmatprep.subr.bf16.mxu0 0
    %2821 = vmatpush1.bf16.xpose.msra.mxu0 %v2788
    %2822 = vmatprep.mubr.bf16.mxu0 0
    %2823 = vmatmul.mubr.bf16.gmra.mrb[0].mxu0 %v2789
    %v2824 = vpop.f32.mrb[0].mxu0
    %v2825 = vadd.f32 0.0, %v2824
    %v2826 = vpop.f32.mrb[0].mxu0
    %v2827 = vadd.f32 0.0, %v2826
    %v2828 = vpop.f32.mrb[0].mxu0
    %v2829 = vpop.f32.mrb[0].mxu0
    %2830 = vdwg.mxu0
    %s2831 = scalar_lea.vmem [#allocation2], 16
    %2832 = vst [vmem:[%s2831] sm:$0xff] %v2825
    %2833 = vst [vmem:[%s2831 + $0x8] sm:$0xff] %v2827
    // Predicated region
    $region10: #{tpu_custom_call.1} parent=1 // pred_check
      _
    $region11: #{tpu_custom_call.1} parent=1 // pred_check_branch
      %2835 = sbr.rel (0) target = $region13
    $region12: #{tpu_custom_call.1} parent=1 // pred_region
      %s2837 = ssub.s32 512, 512
      %2838 = vsyncadd [#allocation3], %s2837
      %s2839 = sshll.u32 [#allocation2], 4
      %s2840 = int_to_ptr.vmem [resolvable:$true] %s2839
      %2845 = dma.vmem_to_hbm [thread:$0]  %s2840, 512, %s2, [#allocation3], 256, 256, 16
    $region13: #{tpu_custom_call.1} parent=1 // pred_fallthru
      _
    // Predicated region
    $region14: #{tpu_custom_call.1} parent=1 // pred_check
      _
    $region15: #{tpu_custom_call.1} parent=1 // pred_check_branch
      %2847 = sbr.rel (0) target = $region17
    $region16: #{tpu_custom_call.1} parent=1 // pred_region
      %2848 = dma.done [#allocation3], 512
    $region17: #{tpu_custom_call.1} parent=1 // pred_fallthru
      _
    %2849 = vsyncpa [#allocation3], 1

</llo_original>
